<compile_context>
chip_gen: v6e
topology: v6e:2x2x1
jax: 0.10.0
libtpu: 0.0.40
codegen_flags: <defaults>
</compile_context>

<pallas_src>
import functools

import jax
import jax.numpy as jnp
from jax.experimental import pallas as pl
from jax.experimental.pallas import tpu as pltpu

# ------------------------- model hyper-parameters --------------------------
OUT_CH   = 3
GAB_PARS = 4
N_GAB    = 30
RUN      = 1                       # run=True -> 1
HIDDEN   = 32
OUT_DIM  = 8
N_LAYERS = 3
IN_DIM   = OUT_CH * 2 + RUN        # 7 = LSTM input dim

SEQ   = 8
BATCH = 2
FEAT  = N_GAB * GAB_PARS + RUN     # 121

# ----------------- packed weight-slab row layout (128 lanes) ----------------
ROW_BF    = 128                    # folded input bias (conv bias -> wih0, + b0)
ROW_B1    = 129                    # layer-1 gate bias
ROW_B2    = 130                    # layer-2 gate bias
ROW_BH    = 131                    # head bias   (first OUT_DIM lanes nonzero)
ROW_WH    = 136                    # head weight (HIDDEN rows, first OUT_DIM lanes)
SLAB_ROWS = ROW_WH + HIDDEN        # 168


def _vmem_full(shape):
    """Whole-array block, resident in VMEM (kernel has no grid)."""
    n = len(shape)
    return pl.BlockSpec(shape, lambda *_: (0,) * n)


# --------------------------- fused forward kernel ---------------------------
def _fused_forward_kernel(x_ref, slab_ref, wbig_ref, o_ref,
                          xg_ref, pred_ref, *, seq_len, batch, pred_len):
    f32 = jnp.float32
    H = HIDDEN
    B = batch

    # ---- conv stack + layer-0 input projection, folded into ONE matmul -----
    # W_fold = conv_w @ wih0_eff (pack time); the raw run column hits a zero
    # weight row, and the run-channel duplication is folded into wih0_eff.
    w_fold = slab_ref[0:FEAT, :]                                  # (feat, 4H)
    b_fold = slab_ref[ROW_BF:ROW_BF + 1, :]                       # (1, 4H)
    xg_ref[...] = (jnp.dot(x_ref[...], w_fold,
                           preferred_element_type=f32) + b_fold)  # (seq*B, 4H)

    b1 = slab_ref[ROW_B1:ROW_B1 + 1, :]                           # (1, 4H)
    b2 = slab_ref[ROW_B2:ROW_B2 + 1, :]                           # (1, 4H)
    w_big = wbig_ref[...]                                         # (3H, 12H)

    zeros = jnp.zeros((B, H), f32)
    h0 = h1 = h2 = zeros
    c0 = c1 = c2 = zeros

    def cell(gates, c_prev):                     # gate order (i | f | g | o)
        # 2 EUP pushes on the full 128-lane gate block, slices only for c/h.
        sg = 0.5 * (jnp.tanh(0.5 * gates) + 1.0)                  # sigmoid(all)
        tg = jnp.tanh(gates)
        i_g = sg[:, 0 * H:1 * H]
        f_g = sg[:, 1 * H:2 * H]
        g_g = tg[:, 2 * H:3 * H]
        o_g = sg[:, 3 * H:4 * H]
        c_new = f_g * c_prev + i_g * g_g
        h_new = o_g * jnp.tanh(c_new)
        return h_new, c_new

    start = seq_len - pred_len
    # Wavefront schedule: step s computes layer0@t=s, layer1@t=s-1, layer2@t=s-2
    # with a single block-bidiagonal matmul; every input it needs was produced
    # at step s-1, so one MXU op per step is the whole recurrent critical path.
    for s in range(seq_len + 2):                                  # fully unrolled
        lhs = jnp.concatenate([h0, h1, h2], axis=-1)              # (B, 3H)
        gates = jnp.dot(lhs, w_big, preferred_element_type=f32)   # (B, 12H)

        if s >= 2:                                                # layer 2, t = s-2
            g2 = gates[:, 8 * H:12 * H] + b2
            h2, c2 = cell(g2, c2)
            t2 = s - 2
            if t2 >= start:
                r = (t2 - start) * B
                pred_ref[r:r + B, :] = h2
        if 1 <= s <= seq_len:                                     # layer 1, t = s-1
            g1 = gates[:, 4 * H:8 * H] + b1
            h1, c1 = cell(g1, c1)
        if s < seq_len:                                           # layer 0, t = s
            g0 = gates[:, 0:4 * H] + xg_ref[s * B:(s + 1) * B, :]
            h0, c0 = cell(g0, c0)

    # ---- hidden2pred head: once, lane-dense (zero-padded) weights ----------
    w_head = slab_ref[ROW_WH:ROW_WH + H, :]                       # (H, 4H)
    b_head = slab_ref[ROW_BH:ROW_BH + 1, :]                       # (1, 4H)
    head = jnp.dot(pred_ref[...], w_head, preferred_element_type=f32) + b_head
    o_ref[...] = head[:, :OUT_DIM].astype(o_ref.dtype)


def conv_pred_roi_lstm_forward(par_vals, p):
    seq_len, batch, feat = par_vals.shape
    pred_len = int(seq_len / 2.0)                  # pred_len == 'half'
    x_flat = par_vals.reshape(seq_len * batch, feat)   # leading-dim merge: free

    args = (x_flat, p['slab'], p['w_big'])
    kernel = functools.partial(_fused_forward_kernel, seq_len=seq_len,
                               batch=batch, pred_len=pred_len)
    out_shape = (pred_len * batch, OUT_DIM)
    return pl.pallas_call(
        kernel,
        out_shape=jax.ShapeDtypeStruct(out_shape, jnp.float32),
        in_specs=[_vmem_full(a.shape) for a in args],
        out_specs=_vmem_full(out_shape),
        scratch_shapes=[
            pltpu.VMEM((seq_len * batch, 4 * HIDDEN), jnp.float32),   # x_gates
            pltpu.VMEM((pred_len * batch, HIDDEN), jnp.float32),      # preds
        ],
    )(*args)


# --------------------------- deterministic params --------------------------
def init_params(key):
    ks = jax.random.split(key, 16)
    hi = jax.lax.Precision.HIGHEST
    H = HIDDEN

    def u(k, shape, scale):
        return jax.random.uniform(k, shape, jnp.float32, -scale, scale)

    # conv_par: Conv2d(1, out_ch, (1, gab_pars)) -> weight (out_ch, gab_pars)
    w_par = u(ks[0], (OUT_CH, GAB_PARS), 1.0 / GAB_PARS ** 0.5)
    b_par = u(ks[1], (OUT_CH,), 1.0 / GAB_PARS ** 0.5)
    # conv_gab: Conv2d(out_ch, 2*out_ch, (n_gab, 1)) -> (2*out_ch, out_ch, n_gab)
    w_gab = u(ks[2], (2 * OUT_CH, OUT_CH, N_GAB), 1.0 / (OUT_CH * N_GAB) ** 0.5)
    b_gab = u(ks[3], (2 * OUT_CH,), 1.0 / (OUT_CH * N_GAB) ** 0.5)

    # LSTM (3 layers), gate order (i, f, g, o); bias = b_ih + b_hh combined.
    sc = 1.0 / H ** 0.5
    wih, whh, b = [], [], []
    kidx = 4
    for l in range(N_LAYERS):
        in_l = IN_DIM if l == 0 else H
        wih.append(u(ks[kidx], (4, in_l, H), sc)); kidx += 1
        whh.append(u(ks[kidx], (4, H, H), sc)); kidx += 1
        b.append(u(ks[kidx], (4, 1, H), sc)); kidx += 1

    w_head = u(ks[kidx], (H, OUT_DIM), sc); kidx += 1
    b_head = u(ks[kidx], (1, OUT_DIM), sc)

    # ------------- host-side packing for the fused Pallas kernel -----------
    # (1) both convs fused into one (feat, 2*out_ch) linear map; zero weight
    #     row for the trailing run feature reproduces the [:, :, :-run] slice.
    w_conv = jnp.einsum('cp,dcg->gpd', w_par, w_gab,
                        precision=hi).reshape(N_GAB * GAB_PARS, 2 * OUT_CH)
    b_conv = (jnp.einsum('c,dcg->d', b_par, w_gab, precision=hi)
              + b_gab).reshape(1, 2 * OUT_CH)
    conv_w = jnp.concatenate(
        [w_conv, jnp.zeros((RUN, 2 * OUT_CH), jnp.float32)], axis=0)  # (121, 6)

    # (2) fuse the 4 gates per layer along the output axis -> (in_l, 4H).
    wih_p = [jnp.concatenate([wih[l][k] for k in range(4)], axis=-1)
             for l in range(N_LAYERS)]
    whh_p = [jnp.concatenate([whh[l][k] for k in range(4)], axis=-1)
             for l in range(N_LAYERS)]
    b_p = [jnp.concatenate([b[l][k] for k in range(4)], axis=-1)
           for l in range(N_LAYERS)]

    # (3) fold the run-channel duplication x = [conv6, conv6[:, -1]] into the
    #     layer-0 input weight: last conv column also feeds weight row 6.
    wih0_eff = wih_p[0][:2 * OUT_CH].at[2 * OUT_CH - 1].add(wih_p[0][2 * OUT_CH])

    # (4) fold the conv map into the layer-0 input projection (one matmul
    #     in-kernel over all timesteps).
    w_fold = jnp.dot(conv_w, wih0_eff, precision=hi)              # (feat, 4H)
    b_fold = jnp.dot(b_conv, wih0_eff, precision=hi) + b_p[0]     # (1, 4H)

    # (5) wavefront block-bidiagonal recurrent weight (3H, 12H):
    #     [h0 | h1 | h2] @ w_big = [ layer0 gates | layer1 gates | layer2 gates ]
    w_big = jnp.zeros((3 * H, 12 * H), jnp.float32)
    w_big = w_big.at[0:H,       0:4 * H].set(whh_p[0])        # layer0: h0 @ whh0
    w_big = w_big.at[0:H,       4 * H:8 * H].set(wih_p[1])    # layer1: h0 @ wih1
    w_big = w_big.at[H:2 * H,   4 * H:8 * H].set(whh_p[1])    #         h1 @ whh1
    w_big = w_big.at[H:2 * H,   8 * H:12 * H].set(wih_p[2])   # layer2: h1 @ wih2
    w_big = w_big.at[2 * H:3 * H, 8 * H:12 * H].set(whh_p[2]) #         h2 @ whh2

    # (6) every 128-lane-wide tensor goes into one lane-dense slab -> 3 DMAs.
    slab = jnp.zeros((SLAB_ROWS, 4 * H), jnp.float32)
    slab = slab.at[0:FEAT, :].set(w_fold)
    slab = slab.at[ROW_BF, :].set(b_fold[0])
    slab = slab.at[ROW_B1, :].set(b_p[1][0])
    slab = slab.at[ROW_B2, :].set(b_p[2][0])
    slab = slab.at[ROW_BH, :OUT_DIM].set(b_head[0])
    slab = slab.at[ROW_WH:ROW_WH + H, :OUT_DIM].set(w_head)

    return dict(w_par=w_par, b_par=b_par, w_gab=w_gab, b_gab=b_gab,
                wih=wih, whh=whh, b=b, w_head=w_head, b_head=b_head,
                slab=slab, w_big=w_big)


# ---------------------------- pure-JAX reference ---------------------------
def reference_forward(par_vals, p):
    hi = jax.lax.Precision.HIGHEST
    seq_len, batch, _ = par_vals.shape
    gab = par_vals[:, :, :-RUN].reshape(seq_len * batch, N_GAB, GAB_PARS)
    cp = jnp.einsum('ngp,cp->ncg', gab, p['w_par'], precision=hi) \
        + p['b_par'][None, :, None]
    cg = jnp.einsum('ncg,dcg->nd', cp, p['w_gab'], precision=hi) + p['b_gab'][None, :]
    pv = cg.reshape(seq_len, batch, 2 * OUT_CH)
    # NOTE: matches the PyTorch module exactly: run_data is sliced from the
    # conv output (par_vals was re-assigned before the slice).
    pv = jnp.concatenate([pv, pv[:, :, -RUN:]], axis=-1)

    h = [jnp.zeros((batch, HIDDEN), jnp.float32) for _ in range(N_LAYERS)]
    c = [jnp.zeros((batch, HIDDEN), jnp.float32) for _ in range(N_LAYERS)]
    outs = []
    for t in range(seq_len):
        inp = pv[t]
        for l in range(N_LAYERS):
            g = [jnp.dot(inp, p['wih'][l][k], precision=hi)
                 + jnp.dot(h[l], p['whh'][l][k], precision=hi)
                 + p['b'][l][k] for k in range(4)]
            i_g, f_g = jax.nn.sigmoid(g[0]), jax.nn.sigmoid(g[1])
            g_g, o_g = jnp.tanh(g[2]), jax.nn.sigmoid(g[3])
            c[l] = f_g * c[l] + i_g * g_g
            h[l] = o_g * jnp.tanh(c[l])
            inp = h[l]
        outs.append(inp)
    pred_len = int(seq_len / 2.0)
    pred = jnp.stack(outs[seq_len - pred_len:]).reshape(pred_len * batch, HIDDEN)
    return jnp.dot(pred, p['w_head'], precision=hi) + p['b_head']


# ----------------------------------- main -----------------------------------
if __name__ == "__main__":
    key = jax.random.PRNGKey(0)
    k_par, k_x = jax.random.split(key)
    params = init_params(k_par)
    par_vals = jax.random.normal(k_x, (SEQ, BATCH, FEAT), jnp.float32)

    out = conv_pred_roi_lstm_forward(par_vals, params)
    out = jax.block_until_ready(out)
    assert out.shape == (int(SEQ / 2.0) * BATCH, OUT_DIM)

    ref = jax.block_until_ready(reference_forward(par_vals, params))
    assert jnp.allclose(out, ref, rtol=5e-2, atol=5e-2), "mismatch vs reference"

    print("KERNEL_OK")
</pallas_src>

<mosaic_0001>
module attributes {stable_mosaic.version = 11 : i64} {
  func.func @_fused_forward_kernel(%arg0: memref<16x121xf32, #tpu.memory_space<vmem>>, %arg1: memref<168x128xf32, #tpu.memory_space<vmem>>, %arg2: memref<96x384xf32, #tpu.memory_space<vmem>>, %arg3: memref<8x8xf32, #tpu.memory_space<vmem>>, %arg4: memref<16x128xf32, #tpu.memory_space<vmem>>, %arg5: memref<8x32xf32, #tpu.memory_space<vmem>>) attributes {dimension_semantics = [], scalar_prefetch = 0 : i64, scratch_operands = 2 : i64, tpu.core_type = #tpu.core_type<tc>} {
    %c0 = arith.constant 0 : index
    %c0_0 = arith.constant 0 : index
    %0 = vector.load %arg1[%c0, %c0_0] : memref<168x128xf32, #tpu.memory_space<vmem>>, vector<121x128xf32>
    %c128 = arith.constant 128 : index
    %c0_1 = arith.constant 0 : index
    %1 = vector.load %arg1[%c128, %c0_1] : memref<168x128xf32, #tpu.memory_space<vmem>>, vector<1x128xf32>
    %c0_2 = arith.constant 0 : index
    %c0_3 = arith.constant 0 : index
    %2 = vector.load %arg0[%c0_2, %c0_3] : memref<16x121xf32, #tpu.memory_space<vmem>>, vector<16x121xf32>
    %cst = arith.constant dense<0.000000e+00> : vector<16x128xf32>
    %3 = tpu.matmul %2, %0, %cst {dimension_numbers = #tpu.dot_dimension_numbers<[1], [0], [0], [1], [0, 0, 1, 1], [], []>} : vector<16x121xf32>, vector<121x128xf32>, vector<16x128xf32> -> vector<16x128xf32>
    %4 = vector.broadcast %1 : vector<1x128xf32> to vector<16x128xf32>
    %5 = arith.addf %3, %4 : vector<16x128xf32>
    %c0_4 = arith.constant 0 : index
    %c0_5 = arith.constant 0 : index
    %6 = vector.load %arg4[%c0_4, %c0_5] : memref<16x128xf32, #tpu.memory_space<vmem>>, vector<16x128xf32>
    tpu.vector_store %arg4[%c0_4, %c0_5], %5 {strides = array<i32>} : memref<16x128xf32, #tpu.memory_space<vmem>>, vector<16x128xf32>,
    %c129 = arith.constant 129 : index
    %c0_6 = arith.constant 0 : index
    %7 = vector.load %arg1[%c129, %c0_6] : memref<168x128xf32, #tpu.memory_space<vmem>>, vector<1x128xf32>
    %c130 = arith.constant 130 : index
    %c0_7 = arith.constant 0 : index
    %8 = vector.load %arg1[%c130, %c0_7] : memref<168x128xf32, #tpu.memory_space<vmem>>, vector<1x128xf32>
    %c0_8 = arith.constant 0 : index
    %c0_9 = arith.constant 0 : index
    %9 = vector.load %arg2[%c0_8, %c0_9] : memref<96x384xf32, #tpu.memory_space<vmem>>, vector<96x384xf32>
    %cst_10 = arith.constant 0.000000e+00 : f32
    %10 = vector.broadcast %cst_10 : f32 to vector<2x32xf32>
    %11 = tpu.concatenate %10, %10, %10 in 1 : vector<2x32xf32>, vector<2x32xf32>, vector<2x32xf32> -> vector<2x96xf32>
    %cst_11 = arith.constant dense<0.000000e+00> : vector<2x384xf32>
    %12 = tpu.matmul %11, %9, %cst_11 {dimension_numbers = #tpu.dot_dimension_numbers<[1], [0], [0], [1], [0, 0, 1, 1], [], []>} : vector<2x96xf32>, vector<96x384xf32>, vector<2x384xf32> -> vector<2x384xf32>
    %13 = vector.extract_strided_slice %12 {offsets = [0, 0], sizes = [2, 128], strides = [1, 1]} : vector<2x384xf32> to vector<2x128xf32>
    %c0_12 = arith.constant 0 : index
    %c0_13 = arith.constant 0 : index
    %14 = vector.load %arg4[%c0_12, %c0_13] : memref<16x128xf32, #tpu.memory_space<vmem>>, vector<2x128xf32>
    %15 = arith.addf %13, %14 : vector<2x128xf32>
    %cst_14 = arith.constant 5.000000e-01 : f32
    %16 = vector.broadcast %cst_14 : f32 to vector<2x128xf32>
    %17 = arith.mulf %16, %15 : vector<2x128xf32>
    %18 = math.tanh %17 : vector<2x128xf32>
    %cst_15 = arith.constant 1.000000e+00 : f32
    %19 = vector.broadcast %cst_15 : f32 to vector<2x128xf32>
    %20 = arith.addf %18, %19 : vector<2x128xf32>
    %cst_16 = arith.constant 5.000000e-01 : f32
    %21 = vector.broadcast %cst_16 : f32 to vector<2x128xf32>
    %22 = arith.mulf %21, %20 : vector<2x128xf32>
    %23 = math.tanh %15 : vector<2x128xf32>
    %24 = vector.extract_strided_slice %22 {offsets = [0, 0], sizes = [2, 32], strides = [1, 1]} : vector<2x128xf32> to vector<2x32xf32>
    %25 = vector.extract_strided_slice %22 {offsets = [0, 32], sizes = [2, 32], strides = [1, 1]} : vector<2x128xf32> to vector<2x32xf32>
    %26 = vector.extract_strided_slice %23 {offsets = [0, 64], sizes = [2, 32], strides = [1, 1]} : vector<2x128xf32> to vector<2x32xf32>
    %27 = vector.extract_strided_slice %22 {offsets = [0, 96], sizes = [2, 32], strides = [1, 1]} : vector<2x128xf32> to vector<2x32xf32>
    %28 = arith.mulf %25, %10 : vector<2x32xf32>
    %29 = arith.mulf %24, %26 : vector<2x32xf32>
    %30 = arith.addf %28, %29 : vector<2x32xf32>
    %31 = math.tanh %30 : vector<2x32xf32>
    %32 = arith.mulf %27, %31 : vector<2x32xf32>
    %33 = tpu.concatenate %32, %10, %10 in 1 : vector<2x32xf32>, vector<2x32xf32>, vector<2x32xf32> -> vector<2x96xf32>
    %cst_17 = arith.constant dense<0.000000e+00> : vector<2x384xf32>
    %34 = tpu.matmul %33, %9, %cst_17 {dimension_numbers = #tpu.dot_dimension_numbers<[1], [0], [0], [1], [0, 0, 1, 1], [], []>} : vector<2x96xf32>, vector<96x384xf32>, vector<2x384xf32> -> vector<2x384xf32>
    %35 = vector.extract_strided_slice %34 {offsets = [0, 128], sizes = [2, 128], strides = [1, 1]} : vector<2x384xf32> to vector<2x128xf32>
    %36 = vector.broadcast %7 : vector<1x128xf32> to vector<2x128xf32>
    %37 = arith.addf %35, %36 : vector<2x128xf32>
    %cst_18 = arith.constant 5.000000e-01 : f32
    %38 = vector.broadcast %cst_18 : f32 to vector<2x128xf32>
    %39 = arith.mulf %38, %37 : vector<2x128xf32>
    %40 = math.tanh %39 : vector<2x128xf32>
    %cst_19 = arith.constant 1.000000e+00 : f32
    %41 = vector.broadcast %cst_19 : f32 to vector<2x128xf32>
    %42 = arith.addf %40, %41 : vector<2x128xf32>
    %cst_20 = arith.constant 5.000000e-01 : f32
    %43 = vector.broadcast %cst_20 : f32 to vector<2x128xf32>
    %44 = arith.mulf %43, %42 : vector<2x128xf32>
    %45 = math.tanh %37 : vector<2x128xf32>
    %46 = vector.extract_strided_slice %44 {offsets = [0, 0], sizes = [2, 32], strides = [1, 1]} : vector<2x128xf32> to vector<2x32xf32>
    %47 = vector.extract_strided_slice %44 {offsets = [0, 32], sizes = [2, 32], strides = [1, 1]} : vector<2x128xf32> to vector<2x32xf32>
    %48 = vector.extract_strided_slice %45 {offsets = [0, 64], sizes = [2, 32], strides = [1, 1]} : vector<2x128xf32> to vector<2x32xf32>
    %49 = vector.extract_strided_slice %44 {offsets = [0, 96], sizes = [2, 32], strides = [1, 1]} : vector<2x128xf32> to vector<2x32xf32>
    %50 = arith.mulf %47, %10 : vector<2x32xf32>
    %51 = arith.mulf %46, %48 : vector<2x32xf32>
    %52 = arith.addf %50, %51 : vector<2x32xf32>
    %53 = math.tanh %52 : vector<2x32xf32>
    %54 = arith.mulf %49, %53 : vector<2x32xf32>
    %55 = vector.extract_strided_slice %34 {offsets = [0, 0], sizes = [2, 128], strides = [1, 1]} : vector<2x384xf32> to vector<2x128xf32>
    %c2 = arith.constant 2 : index
    %c0_21 = arith.constant 0 : index
    %56 = vector.load %arg4[%c2, %c0_21] : memref<16x128xf32, #tpu.memory_space<vmem>>, vector<2x128xf32>
    %57 = arith.addf %55, %56 : vector<2x128xf32>
    %cst_22 = arith.constant 5.000000e-01 : f32
    %58 = vector.broadcast %cst_22 : f32 to vector<2x128xf32>
    %59 = arith.mulf %58, %57 : vector<2x128xf32>
    %60 = math.tanh %59 : vector<2x128xf32>
    %cst_23 = arith.constant 1.000000e+00 : f32
    %61 = vector.broadcast %cst_23 : f32 to vector<2x128xf32>
    %62 = arith.addf %60, %61 : vector<2x128xf32>
    %cst_24 = arith.constant 5.000000e-01 : f32
    %63 = vector.broadcast %cst_24 : f32 to vector<2x128xf32>
    %64 = arith.mulf %63, %62 : vector<2x128xf32>
    %65 = math.tanh %57 : vector<2x128xf32>
    %66 = vector.extract_strided_slice %64 {offsets = [0, 0], sizes = [2, 32], strides = [1, 1]} : vector<2x128xf32> to vector<2x32xf32>
    %67 = vector.extract_strided_slice %64 {offsets = [0, 32], sizes = [2, 32], strides = [1, 1]} : vector<2x128xf32> to vector<2x32xf32>
    %68 = vector.extract_strided_slice %65 {offsets = [0, 64], sizes = [2, 32], strides = [1, 1]} : vector<2x128xf32> to vector<2x32xf32>
    %69 = vector.extract_strided_slice %64 {offsets = [0, 96], sizes = [2, 32], strides = [1, 1]} : vector<2x128xf32> to vector<2x32xf32>
    %70 = arith.mulf %67, %30 : vector<2x32xf32>
    %71 = arith.mulf %66, %68 : vector<2x32xf32>
    %72 = arith.addf %70, %71 : vector<2x32xf32>
    %73 = math.tanh %72 : vector<2x32xf32>
    %74 = arith.mulf %69, %73 : vector<2x32xf32>
    %75 = tpu.concatenate %74, %54, %10 in 1 : vector<2x32xf32>, vector<2x32xf32>, vector<2x32xf32> -> vector<2x96xf32>
    %cst_25 = arith.constant dense<0.000000e+00> : vector<2x384xf32>
    %76 = tpu.matmul %75, %9, %cst_25 {dimension_numbers = #tpu.dot_dimension_numbers<[1], [0], [0], [1], [0, 0, 1, 1], [], []>} : vector<2x96xf32>, vector<96x384xf32>, vector<2x384xf32> -> vector<2x384xf32>
    %77 = vector.extract_strided_slice %76 {offsets = [0, 256], sizes = [2, 128], strides = [1, 1]} : vector<2x384xf32> to vector<2x128xf32>
    %78 = vector.broadcast %8 : vector<1x128xf32> to vector<2x128xf32>
    %79 = arith.addf %77, %78 : vector<2x128xf32>
    %cst_26 = arith.constant 5.000000e-01 : f32
    %80 = vector.broadcast %cst_26 : f32 to vector<2x128xf32>
    %81 = arith.mulf %80, %79 : vector<2x128xf32>
    %82 = math.tanh %81 : vector<2x128xf32>
    %cst_27 = arith.constant 1.000000e+00 : f32
    %83 = vector.broadcast %cst_27 : f32 to vector<2x128xf32>
    %84 = arith.addf %82, %83 : vector<2x128xf32>
    %cst_28 = arith.constant 5.000000e-01 : f32
    %85 = vector.broadcast %cst_28 : f32 to vector<2x128xf32>
    %86 = arith.mulf %85, %84 : vector<2x128xf32>
    %87 = math.tanh %79 : vector<2x128xf32>
    %88 = vector.extract_strided_slice %86 {offsets = [0, 0], sizes = [2, 32], strides = [1, 1]} : vector<2x128xf32> to vector<2x32xf32>
    %89 = vector.extract_strided_slice %86 {offsets = [0, 32], sizes = [2, 32], strides = [1, 1]} : vector<2x128xf32> to vector<2x32xf32>
    %90 = vector.extract_strided_slice %87 {offsets = [0, 64], sizes = [2, 32], strides = [1, 1]} : vector<2x128xf32> to vector<2x32xf32>
    %91 = vector.extract_strided_slice %86 {offsets = [0, 96], sizes = [2, 32], strides = [1, 1]} : vector<2x128xf32> to vector<2x32xf32>
    %92 = arith.mulf %89, %10 : vector<2x32xf32>
    %93 = arith.mulf %88, %90 : vector<2x32xf32>
    %94 = arith.addf %92, %93 : vector<2x32xf32>
    %95 = math.tanh %94 : vector<2x32xf32>
    %96 = arith.mulf %91, %95 : vector<2x32xf32>
    %97 = vector.extract_strided_slice %76 {offsets = [0, 128], sizes = [2, 128], strides = [1, 1]} : vector<2x384xf32> to vector<2x128xf32>
    %98 = vector.broadcast %7 : vector<1x128xf32> to vector<2x128xf32>
    %99 = arith.addf %97, %98 : vector<2x128xf32>
    %cst_29 = arith.constant 5.000000e-01 : f32
    %100 = vector.broadcast %cst_29 : f32 to vector<2x128xf32>
    %101 = arith.mulf %100, %99 : vector<2x128xf32>
    %102 = math.tanh %101 : vector<2x128xf32>
    %cst_30 = arith.constant 1.000000e+00 : f32
    %103 = vector.broadcast %cst_30 : f32 to vector<2x128xf32>
    %104 = arith.addf %102, %103 : vector<2x128xf32>
    %cst_31 = arith.constant 5.000000e-01 : f32
    %105 = vector.broadcast %cst_31 : f32 to vector<2x128xf32>
    %106 = arith.mulf %105, %104 : vector<2x128xf32>
    %107 = math.tanh %99 : vector<2x128xf32>
    %108 = vector.extract_strided_slice %106 {offsets = [0, 0], sizes = [2, 32], strides = [1, 1]} : vector<2x128xf32> to vector<2x32xf32>
    %109 = vector.extract_strided_slice %106 {offsets = [0, 32], sizes = [2, 32], strides = [1, 1]} : vector<2x128xf32> to vector<2x32xf32>
    %110 = vector.extract_strided_slice %107 {offsets = [0, 64], sizes = [2, 32], strides = [1, 1]} : vector<2x128xf32> to vector<2x32xf32>
    %111 = vector.extract_strided_slice %106 {offsets = [0, 96], sizes = [2, 32], strides = [1, 1]} : vector<2x128xf32> to vector<2x32xf32>
    %112 = arith.mulf %109, %52 : vector<2x32xf32>
    %113 = arith.mulf %108, %110 : vector<2x32xf32>
    %114 = arith.addf %112, %113 : vector<2x32xf32>
    %115 = math.tanh %114 : vector<2x32xf32>
    %116 = arith.mulf %111, %115 : vector<2x32xf32>
    %117 = vector.extract_strided_slice %76 {offsets = [0, 0], sizes = [2, 128], strides = [1, 1]} : vector<2x384xf32> to vector<2x128xf32>
    %c4 = arith.constant 4 : index
    %c0_32 = arith.constant 0 : index
    %118 = vector.load %arg4[%c4, %c0_32] : memref<16x128xf32, #tpu.memory_space<vmem>>, vector<2x128xf32>
    %119 = arith.addf %117, %118 : vector<2x128xf32>
    %cst_33 = arith.constant 5.000000e-01 : f32
    %120 = vector.broadcast %cst_33 : f32 to vector<2x128xf32>
    %121 = arith.mulf %120, %119 : vector<2x128xf32>
    %122 = math.tanh %121 : vector<2x128xf32>
    %cst_34 = arith.constant 1.000000e+00 : f32
    %123 = vector.broadcast %cst_34 : f32 to vector<2x128xf32>
    %124 = arith.addf %122, %123 : vector<2x128xf32>
    %cst_35 = arith.constant 5.000000e-01 : f32
    %125 = vector.broadcast %cst_35 : f32 to vector<2x128xf32>
    %126 = arith.mulf %125, %124 : vector<2x128xf32>
    %127 = math.tanh %119 : vector<2x128xf32>
    %128 = vector.extract_strided_slice %126 {offsets = [0, 0], sizes = [2, 32], strides = [1, 1]} : vector<2x128xf32> to vector<2x32xf32>
    %129 = vector.extract_strided_slice %126 {offsets = [0, 32], sizes = [2, 32], strides = [1, 1]} : vector<2x128xf32> to vector<2x32xf32>
    %130 = vector.extract_strided_slice %127 {offsets = [0, 64], sizes = [2, 32], strides = [1, 1]} : vector<2x128xf32> to vector<2x32xf32>
    %131 = vector.extract_strided_slice %126 {offsets = [0, 96], sizes = [2, 32], strides = [1, 1]} : vector<2x128xf32> to vector<2x32xf32>
    %132 = arith.mulf %129, %72 : vector<2x32xf32>
    %133 = arith.mulf %128, %130 : vector<2x32xf32>
    %134 = arith.addf %132, %133 : vector<2x32xf32>
    %135 = math.tanh %134 : vector<2x32xf32>
    %136 = arith.mulf %131, %135 : vector<2x32xf32>
    %137 = tpu.concatenate %136, %116, %96 in 1 : vector<2x32xf32>, vector<2x32xf32>, vector<2x32xf32> -> vector<2x96xf32>
    %cst_36 = arith.constant dense<0.000000e+00> : vector<2x384xf32>
    %138 = tpu.matmul %137, %9, %cst_36 {dimension_numbers = #tpu.dot_dimension_numbers<[1], [0], [0], [1], [0, 0, 1, 1], [], []>} : vector<2x96xf32>, vector<96x384xf32>, vector<2x384xf32> -> vector<2x384xf32>
    %139 = vector.extract_strided_slice %138 {offsets = [0, 256], sizes = [2, 128], strides = [1, 1]} : vector<2x384xf32> to vector<2x128xf32>
    %140 = vector.broadcast %8 : vector<1x128xf32> to vector<2x128xf32>
    %141 = arith.addf %139, %140 : vector<2x128xf32>
    %cst_37 = arith.constant 5.000000e-01 : f32
    %142 = vector.broadcast %cst_37 : f32 to vector<2x128xf32>
    %143 = arith.mulf %142, %141 : vector<2x128xf32>
    %144 = math.tanh %143 : vector<2x128xf32>
    %cst_38 = arith.constant 1.000000e+00 : f32
    %145 = vector.broadcast %cst_38 : f32 to vector<2x128xf32>
    %146 = arith.addf %144, %145 : vector<2x128xf32>
    %cst_39 = arith.constant 5.000000e-01 : f32
    %147 = vector.broadcast %cst_39 : f32 to vector<2x128xf32>
    %148 = arith.mulf %147, %146 : vector<2x128xf32>
    %149 = math.tanh %141 : vector<2x128xf32>
    %150 = vector.extract_strided_slice %148 {offsets = [0, 0], sizes = [2, 32], strides = [1, 1]} : vector<2x128xf32> to vector<2x32xf32>
    %151 = vector.extract_strided_slice %148 {offsets = [0, 32], sizes = [2, 32], strides = [1, 1]} : vector<2x128xf32> to vector<2x32xf32>
    %152 = vector.extract_strided_slice %149 {offsets = [0, 64], sizes = [2, 32], strides = [1, 1]} : vector<2x128xf32> to vector<2x32xf32>
    %153 = vector.extract_strided_slice %148 {offsets = [0, 96], sizes = [2, 32], strides = [1, 1]} : vector<2x128xf32> to vector<2x32xf32>
    %154 = arith.mulf %151, %94 : vector<2x32xf32>
    %155 = arith.mulf %150, %152 : vector<2x32xf32>
    %156 = arith.addf %154, %155 : vector<2x32xf32>
    %157 = math.tanh %156 : vector<2x32xf32>
    %158 = arith.mulf %153, %157 : vector<2x32xf32>
    %159 = vector.extract_strided_slice %138 {offsets = [0, 128], sizes = [2, 128], strides = [1, 1]} : vector<2x384xf32> to vector<2x128xf32>
    %160 = vector.broadcast %7 : vector<1x128xf32> to vector<2x128xf32>
    %161 = arith.addf %159, %160 : vector<2x128xf32>
    %cst_40 = arith.constant 5.000000e-01 : f32
    %162 = vector.broadcast %cst_40 : f32 to vector<2x128xf32>
    %163 = arith.mulf %162, %161 : vector<2x128xf32>
    %164 = math.tanh %163 : vector<2x128xf32>
    %cst_41 = arith.constant 1.000000e+00 : f32
    %165 = vector.broadcast %cst_41 : f32 to vector<2x128xf32>
    %166 = arith.addf %164, %165 : vector<2x128xf32>
    %cst_42 = arith.constant 5.000000e-01 : f32
    %167 = vector.broadcast %cst_42 : f32 to vector<2x128xf32>
    %168 = arith.mulf %167, %166 : vector<2x128xf32>
    %169 = math.tanh %161 : vector<2x128xf32>
    %170 = vector.extract_strided_slice %168 {offsets = [0, 0], sizes = [2, 32], strides = [1, 1]} : vector<2x128xf32> to vector<2x32xf32>
    %171 = vector.extract_strided_slice %168 {offsets = [0, 32], sizes = [2, 32], strides = [1, 1]} : vector<2x128xf32> to vector<2x32xf32>
    %172 = vector.extract_strided_slice %169 {offsets = [0, 64], sizes = [2, 32], strides = [1, 1]} : vector<2x128xf32> to vector<2x32xf32>
    %173 = vector.extract_strided_slice %168 {offsets = [0, 96], sizes = [2, 32], strides = [1, 1]} : vector<2x128xf32> to vector<2x32xf32>
    %174 = arith.mulf %171, %114 : vector<2x32xf32>
    %175 = arith.mulf %170, %172 : vector<2x32xf32>
    %176 = arith.addf %174, %175 : vector<2x32xf32>
    %177 = math.tanh %176 : vector<2x32xf32>
    %178 = arith.mulf %173, %177 : vector<2x32xf32>
    %179 = vector.extract_strided_slice %138 {offsets = [0, 0], sizes = [2, 128], strides = [1, 1]} : vector<2x384xf32> to vector<2x128xf32>
    %c6 = arith.constant 6 : index
    %c0_43 = arith.constant 0 : index
    %180 = vector.load %arg4[%c6, %c0_43] : memref<16x128xf32, #tpu.memory_space<vmem>>, vector<2x128xf32>
    %181 = arith.addf %179, %180 : vector<2x128xf32>
    %cst_44 = arith.constant 5.000000e-01 : f32
    %182 = vector.broadcast %cst_44 : f32 to vector<2x128xf32>
    %183 = arith.mulf %182, %181 : vector<2x128xf32>
    %184 = math.tanh %183 : vector<2x128xf32>
    %cst_45 = arith.constant 1.000000e+00 : f32
    %185 = vector.broadcast %cst_45 : f32 to vector<2x128xf32>
    %186 = arith.addf %184, %185 : vector<2x128xf32>
    %cst_46 = arith.constant 5.000000e-01 : f32
    %187 = vector.broadcast %cst_46 : f32 to vector<2x128xf32>
    %188 = arith.mulf %187, %186 : vector<2x128xf32>
    %189 = math.tanh %181 : vector<2x128xf32>
    %190 = vector.extract_strided_slice %188 {offsets = [0, 0], sizes = [2, 32], strides = [1, 1]} : vector<2x128xf32> to vector<2x32xf32>
    %191 = vector.extract_strided_slice %188 {offsets = [0, 32], sizes = [2, 32], strides = [1, 1]} : vector<2x128xf32> to vector<2x32xf32>
    %192 = vector.extract_strided_slice %189 {offsets = [0, 64], sizes = [2, 32], strides = [1, 1]} : vector<2x128xf32> to vector<2x32xf32>
    %193 = vector.extract_strided_slice %188 {offsets = [0, 96], sizes = [2, 32], strides = [1, 1]} : vector<2x128xf32> to vector<2x32xf32>
    %194 = arith.mulf %191, %134 : vector<2x32xf32>
    %195 = arith.mulf %190, %192 : vector<2x32xf32>
    %196 = arith.addf %194, %195 : vector<2x32xf32>
    %197 = math.tanh %196 : vector<2x32xf32>
    %198 = arith.mulf %193, %197 : vector<2x32xf32>
    %199 = tpu.concatenate %198, %178, %158 in 1 : vector<2x32xf32>, vector<2x32xf32>, vector<2x32xf32> -> vector<2x96xf32>
    %cst_47 = arith.constant dense<0.000000e+00> : vector<2x384xf32>
    %200 = tpu.matmul %199, %9, %cst_47 {dimension_numbers = #tpu.dot_dimension_numbers<[1], [0], [0], [1], [0, 0, 1, 1], [], []>} : vector<2x96xf32>, vector<96x384xf32>, vector<2x384xf32> -> vector<2x384xf32>
    %201 = vector.extract_strided_slice %200 {offsets = [0, 256], sizes = [2, 128], strides = [1, 1]} : vector<2x384xf32> to vector<2x128xf32>
    %202 = vector.broadcast %8 : vector<1x128xf32> to vector<2x128xf32>
    %203 = arith.addf %201, %202 : vector<2x128xf32>
    %cst_48 = arith.constant 5.000000e-01 : f32
    %204 = vector.broadcast %cst_48 : f32 to vector<2x128xf32>
    %205 = arith.mulf %204, %203 : vector<2x128xf32>
    %206 = math.tanh %205 : vector<2x128xf32>
    %cst_49 = arith.constant 1.000000e+00 : f32
    %207 = vector.broadcast %cst_49 : f32 to vector<2x128xf32>
    %208 = arith.addf %206, %207 : vector<2x128xf32>
    %cst_50 = arith.constant 5.000000e-01 : f32
    %209 = vector.broadcast %cst_50 : f32 to vector<2x128xf32>
    %210 = arith.mulf %209, %208 : vector<2x128xf32>
    %211 = math.tanh %203 : vector<2x128xf32>
    %212 = vector.extract_strided_slice %210 {offsets = [0, 0], sizes = [2, 32], strides = [1, 1]} : vector<2x128xf32> to vector<2x32xf32>
    %213 = vector.extract_strided_slice %210 {offsets = [0, 32], sizes = [2, 32], strides = [1, 1]} : vector<2x128xf32> to vector<2x32xf32>
    %214 = vector.extract_strided_slice %211 {offsets = [0, 64], sizes = [2, 32], strides = [1, 1]} : vector<2x128xf32> to vector<2x32xf32>
    %215 = vector.extract_strided_slice %210 {offsets = [0, 96], sizes = [2, 32], strides = [1, 1]} : vector<2x128xf32> to vector<2x32xf32>
    %216 = arith.mulf %213, %156 : vector<2x32xf32>
    %217 = arith.mulf %212, %214 : vector<2x32xf32>
    %218 = arith.addf %216, %217 : vector<2x32xf32>
    %219 = math.tanh %218 : vector<2x32xf32>
    %220 = arith.mulf %215, %219 : vector<2x32xf32>
    %221 = vector.extract_strided_slice %200 {offsets = [0, 128], sizes = [2, 128], strides = [1, 1]} : vector<2x384xf32> to vector<2x128xf32>
    %222 = vector.broadcast %7 : vector<1x128xf32> to vector<2x128xf32>
    %223 = arith.addf %221, %222 : vector<2x128xf32>
    %cst_51 = arith.constant 5.000000e-01 : f32
    %224 = vector.broadcast %cst_51 : f32 to vector<2x128xf32>
    %225 = arith.mulf %224, %223 : vector<2x128xf32>
    %226 = math.tanh %225 : vector<2x128xf32>
    %cst_52 = arith.constant 1.000000e+00 : f32
    %227 = vector.broadcast %cst_52 : f32 to vector<2x128xf32>
    %228 = arith.addf %226, %227 : vector<2x128xf32>
    %cst_53 = arith.constant 5.000000e-01 : f32
    %229 = vector.broadcast %cst_53 : f32 to vector<2x128xf32>
    %230 = arith.mulf %229, %228 : vector<2x128xf32>
    %231 = math.tanh %223 : vector<2x128xf32>
    %232 = vector.extract_strided_slice %230 {offsets = [0, 0], sizes = [2, 32], strides = [1, 1]} : vector<2x128xf32> to vector<2x32xf32>
    %233 = vector.extract_strided_slice %230 {offsets = [0, 32], sizes = [2, 32], strides = [1, 1]} : vector<2x128xf32> to vector<2x32xf32>
    %234 = vector.extract_strided_slice %231 {offsets = [0, 64], sizes = [2, 32], strides = [1, 1]} : vector<2x128xf32> to vector<2x32xf32>
    %235 = vector.extract_strided_slice %230 {offsets = [0, 96], sizes = [2, 32], strides = [1, 1]} : vector<2x128xf32> to vector<2x32xf32>
    %236 = arith.mulf %233, %176 : vector<2x32xf32>
    %237 = arith.mulf %232, %234 : vector<2x32xf32>
    %238 = arith.addf %236, %237 : vector<2x32xf32>
    %239 = math.tanh %238 : vector<2x32xf32>
    %240 = arith.mulf %235, %239 : vector<2x32xf32>
    %241 = vector.extract_strided_slice %200 {offsets = [0, 0], sizes = [2, 128], strides = [1, 1]} : vector<2x384xf32> to vector<2x128xf32>
    %c8 = arith.constant 8 : index
    %c0_54 = arith.constant 0 : index
    %242 = vector.load %arg4[%c8, %c0_54] : memref<16x128xf32, #tpu.memory_space<vmem>>, vector<2x128xf32>
    %243 = arith.addf %241, %242 : vector<2x128xf32>
    %cst_55 = arith.constant 5.000000e-01 : f32
    %244 = vector.broadcast %cst_55 : f32 to vector<2x128xf32>
    %245 = arith.mulf %244, %243 : vector<2x128xf32>
    %246 = math.tanh %245 : vector<2x128xf32>
    %cst_56 = arith.constant 1.000000e+00 : f32
    %247 = vector.broadcast %cst_56 : f32 to vector<2x128xf32>
    %248 = arith.addf %246, %247 : vector<2x128xf32>
    %cst_57 = arith.constant 5.000000e-01 : f32
    %249 = vector.broadcast %cst_57 : f32 to vector<2x128xf32>
    %250 = arith.mulf %249, %248 : vector<2x128xf32>
    %251 = math.tanh %243 : vector<2x128xf32>
    %252 = vector.extract_strided_slice %250 {offsets = [0, 0], sizes = [2, 32], strides = [1, 1]} : vector<2x128xf32> to vector<2x32xf32>
    %253 = vector.extract_strided_slice %250 {offsets = [0, 32], sizes = [2, 32], strides = [1, 1]} : vector<2x128xf32> to vector<2x32xf32>
    %254 = vector.extract_strided_slice %251 {offsets = [0, 64], sizes = [2, 32], strides = [1, 1]} : vector<2x128xf32> to vector<2x32xf32>
    %255 = vector.extract_strided_slice %250 {offsets = [0, 96], sizes = [2, 32], strides = [1, 1]} : vector<2x128xf32> to vector<2x32xf32>
    %256 = arith.mulf %253, %196 : vector<2x32xf32>
    %257 = arith.mulf %252, %254 : vector<2x32xf32>
    %258 = arith.addf %256, %257 : vector<2x32xf32>
    %259 = math.tanh %258 : vector<2x32xf32>
    %260 = arith.mulf %255, %259 : vector<2x32xf32>
    %261 = tpu.concatenate %260, %240, %220 in 1 : vector<2x32xf32>, vector<2x32xf32>, vector<2x32xf32> -> vector<2x96xf32>
    %cst_58 = arith.constant dense<0.000000e+00> : vector<2x384xf32>
    %262 = tpu.matmul %261, %9, %cst_58 {dimension_numbers = #tpu.dot_dimension_numbers<[1], [0], [0], [1], [0, 0, 1, 1], [], []>} : vector<2x96xf32>, vector<96x384xf32>, vector<2x384xf32> -> vector<2x384xf32>
    %263 = vector.extract_strided_slice %262 {offsets = [0, 256], sizes = [2, 128], strides = [1, 1]} : vector<2x384xf32> to vector<2x128xf32>
    %264 = vector.broadcast %8 : vector<1x128xf32> to vector<2x128xf32>
    %265 = arith.addf %263, %264 : vector<2x128xf32>
    %cst_59 = arith.constant 5.000000e-01 : f32
    %266 = vector.broadcast %cst_59 : f32 to vector<2x128xf32>
    %267 = arith.mulf %266, %265 : vector<2x128xf32>
    %268 = math.tanh %267 : vector<2x128xf32>
    %cst_60 = arith.constant 1.000000e+00 : f32
    %269 = vector.broadcast %cst_60 : f32 to vector<2x128xf32>
    %270 = arith.addf %268, %269 : vector<2x128xf32>
    %cst_61 = arith.constant 5.000000e-01 : f32
    %271 = vector.broadcast %cst_61 : f32 to vector<2x128xf32>
    %272 = arith.mulf %271, %270 : vector<2x128xf32>
    %273 = math.tanh %265 : vector<2x128xf32>
    %274 = vector.extract_strided_slice %272 {offsets = [0, 0], sizes = [2, 32], strides = [1, 1]} : vector<2x128xf32> to vector<2x32xf32>
    %275 = vector.extract_strided_slice %272 {offsets = [0, 32], sizes = [2, 32], strides = [1, 1]} : vector<2x128xf32> to vector<2x32xf32>
    %276 = vector.extract_strided_slice %273 {offsets = [0, 64], sizes = [2, 32], strides = [1, 1]} : vector<2x128xf32> to vector<2x32xf32>
    %277 = vector.extract_strided_slice %272 {offsets = [0, 96], sizes = [2, 32], strides = [1, 1]} : vector<2x128xf32> to vector<2x32xf32>
    %278 = arith.mulf %275, %218 : vector<2x32xf32>
    %279 = arith.mulf %274, %276 : vector<2x32xf32>
    %280 = arith.addf %278, %279 : vector<2x32xf32>
    %281 = math.tanh %280 : vector<2x32xf32>
    %282 = arith.mulf %277, %281 : vector<2x32xf32>
    %283 = vector.extract_strided_slice %262 {offsets = [0, 128], sizes = [2, 128], strides = [1, 1]} : vector<2x384xf32> to vector<2x128xf32>
    %284 = vector.broadcast %7 : vector<1x128xf32> to vector<2x128xf32>
    %285 = arith.addf %283, %284 : vector<2x128xf32>
    %cst_62 = arith.constant 5.000000e-01 : f32
    %286 = vector.broadcast %cst_62 : f32 to vector<2x128xf32>
    %287 = arith.mulf %286, %285 : vector<2x128xf32>
    %288 = math.tanh %287 : vector<2x128xf32>
    %cst_63 = arith.constant 1.000000e+00 : f32
    %289 = vector.broadcast %cst_63 : f32 to vector<2x128xf32>
    %290 = arith.addf %288, %289 : vector<2x128xf32>
    %cst_64 = arith.constant 5.000000e-01 : f32
    %291 = vector.broadcast %cst_64 : f32 to vector<2x128xf32>
    %292 = arith.mulf %291, %290 : vector<2x128xf32>
    %293 = math.tanh %285 : vector<2x128xf32>
    %294 = vector.extract_strided_slice %292 {offsets = [0, 0], sizes = [2, 32], strides = [1, 1]} : vector<2x128xf32> to vector<2x32xf32>
    %295 = vector.extract_strided_slice %292 {offsets = [0, 32], sizes = [2, 32], strides = [1, 1]} : vector<2x128xf32> to vector<2x32xf32>
    %296 = vector.extract_strided_slice %293 {offsets = [0, 64], sizes = [2, 32], strides = [1, 1]} : vector<2x128xf32> to vector<2x32xf32>
    %297 = vector.extract_strided_slice %292 {offsets = [0, 96], sizes = [2, 32], strides = [1, 1]} : vector<2x128xf32> to vector<2x32xf32>
    %298 = arith.mulf %295, %238 : vector<2x32xf32>
    %299 = arith.mulf %294, %296 : vector<2x32xf32>
    %300 = arith.addf %298, %299 : vector<2x32xf32>
    %301 = math.tanh %300 : vector<2x32xf32>
    %302 = arith.mulf %297, %301 : vector<2x32xf32>
    %303 = vector.extract_strided_slice %262 {offsets = [0, 0], sizes = [2, 128], strides = [1, 1]} : vector<2x384xf32> to vector<2x128xf32>
    %c10 = arith.constant 10 : index
    %c0_65 = arith.constant 0 : index
    %304 = vector.load %arg4[%c10, %c0_65] : memref<16x128xf32, #tpu.memory_space<vmem>>, vector<2x128xf32>
    %305 = arith.addf %303, %304 : vector<2x128xf32>
    %cst_66 = arith.constant 5.000000e-01 : f32
    %306 = vector.broadcast %cst_66 : f32 to vector<2x128xf32>
    %307 = arith.mulf %306, %305 : vector<2x128xf32>
    %308 = math.tanh %307 : vector<2x128xf32>
    %cst_67 = arith.constant 1.000000e+00 : f32
    %309 = vector.broadcast %cst_67 : f32 to vector<2x128xf32>
    %310 = arith.addf %308, %309 : vector<2x128xf32>
    %cst_68 = arith.constant 5.000000e-01 : f32
    %311 = vector.broadcast %cst_68 : f32 to vector<2x128xf32>
    %312 = arith.mulf %311, %310 : vector<2x128xf32>
    %313 = math.tanh %305 : vector<2x128xf32>
    %314 = vector.extract_strided_slice %312 {offsets = [0, 0], sizes = [2, 32], strides = [1, 1]} : vector<2x128xf32> to vector<2x32xf32>
    %315 = vector.extract_strided_slice %312 {offsets = [0, 32], sizes = [2, 32], strides = [1, 1]} : vector<2x128xf32> to vector<2x32xf32>
    %316 = vector.extract_strided_slice %313 {offsets = [0, 64], sizes = [2, 32], strides = [1, 1]} : vector<2x128xf32> to vector<2x32xf32>
    %317 = vector.extract_strided_slice %312 {offsets = [0, 96], sizes = [2, 32], strides = [1, 1]} : vector<2x128xf32> to vector<2x32xf32>
    %318 = arith.mulf %315, %258 : vector<2x32xf32>
    %319 = arith.mulf %314, %316 : vector<2x32xf32>
    %320 = arith.addf %318, %319 : vector<2x32xf32>
    %321 = math.tanh %320 : vector<2x32xf32>
    %322 = arith.mulf %317, %321 : vector<2x32xf32>
    %323 = tpu.concatenate %322, %302, %282 in 1 : vector<2x32xf32>, vector<2x32xf32>, vector<2x32xf32> -> vector<2x96xf32>
    %cst_69 = arith.constant dense<0.000000e+00> : vector<2x384xf32>
    %324 = tpu.matmul %323, %9, %cst_69 {dimension_numbers = #tpu.dot_dimension_numbers<[1], [0], [0], [1], [0, 0, 1, 1], [], []>} : vector<2x96xf32>, vector<96x384xf32>, vector<2x384xf32> -> vector<2x384xf32>
    %325 = vector.extract_strided_slice %324 {offsets = [0, 256], sizes = [2, 128], strides = [1, 1]} : vector<2x384xf32> to vector<2x128xf32>
    %326 = vector.broadcast %8 : vector<1x128xf32> to vector<2x128xf32>
    %327 = arith.addf %325, %326 : vector<2x128xf32>
    %cst_70 = arith.constant 5.000000e-01 : f32
    %328 = vector.broadcast %cst_70 : f32 to vector<2x128xf32>
    %329 = arith.mulf %328, %327 : vector<2x128xf32>
    %330 = math.tanh %329 : vector<2x128xf32>
    %cst_71 = arith.constant 1.000000e+00 : f32
    %331 = vector.broadcast %cst_71 : f32 to vector<2x128xf32>
    %332 = arith.addf %330, %331 : vector<2x128xf32>
    %cst_72 = arith.constant 5.000000e-01 : f32
    %333 = vector.broadcast %cst_72 : f32 to vector<2x128xf32>
    %334 = arith.mulf %333, %332 : vector<2x128xf32>
    %335 = math.tanh %327 : vector<2x128xf32>
    %336 = vector.extract_strided_slice %334 {offsets = [0, 0], sizes = [2, 32], strides = [1, 1]} : vector<2x128xf32> to vector<2x32xf32>
    %337 = vector.extract_strided_slice %334 {offsets = [0, 32], sizes = [2, 32], strides = [1, 1]} : vector<2x128xf32> to vector<2x32xf32>
    %338 = vector.extract_strided_slice %335 {offsets = [0, 64], sizes = [2, 32], strides = [1, 1]} : vector<2x128xf32> to vector<2x32xf32>
    %339 = vector.extract_strided_slice %334 {offsets = [0, 96], sizes = [2, 32], strides = [1, 1]} : vector<2x128xf32> to vector<2x32xf32>
    %340 = arith.mulf %337, %280 : vector<2x32xf32>
    %341 = arith.mulf %336, %338 : vector<2x32xf32>
    %342 = arith.addf %340, %341 : vector<2x32xf32>
    %343 = math.tanh %342 : vector<2x32xf32>
    %344 = arith.mulf %339, %343 : vector<2x32xf32>
    %c0_73 = arith.constant 0 : index
    %c0_74 = arith.constant 0 : index
    %345 = vector.load %arg5[%c0_73, %c0_74] : memref<8x32xf32, #tpu.memory_space<vmem>>, vector<2x32xf32>
    tpu.vector_store %arg5[%c0_73, %c0_74], %344 {strides = array<i32>} : memref<8x32xf32, #tpu.memory_space<vmem>>, vector<2x32xf32>,
    %346 = vector.extract_strided_slice %324 {offsets = [0, 128], sizes = [2, 128], strides = [1, 1]} : vector<2x384xf32> to vector<2x128xf32>
    %347 = vector.broadcast %7 : vector<1x128xf32> to vector<2x128xf32>
    %348 = arith.addf %346, %347 : vector<2x128xf32>
    %cst_75 = arith.constant 5.000000e-01 : f32
    %349 = vector.broadcast %cst_75 : f32 to vector<2x128xf32>
    %350 = arith.mulf %349, %348 : vector<2x128xf32>
    %351 = math.tanh %350 : vector<2x128xf32>
    %cst_76 = arith.constant 1.000000e+00 : f32
    %352 = vector.broadcast %cst_76 : f32 to vector<2x128xf32>
    %353 = arith.addf %351, %352 : vector<2x128xf32>
    %cst_77 = arith.constant 5.000000e-01 : f32
    %354 = vector.broadcast %cst_77 : f32 to vector<2x128xf32>
    %355 = arith.mulf %354, %353 : vector<2x128xf32>
    %356 = math.tanh %348 : vector<2x128xf32>
    %357 = vector.extract_strided_slice %355 {offsets = [0, 0], sizes = [2, 32], strides = [1, 1]} : vector<2x128xf32> to vector<2x32xf32>
    %358 = vector.extract_strided_slice %355 {offsets = [0, 32], sizes = [2, 32], strides = [1, 1]} : vector<2x128xf32> to vector<2x32xf32>
    %359 = vector.extract_strided_slice %356 {offsets = [0, 64], sizes = [2, 32], strides = [1, 1]} : vector<2x128xf32> to vector<2x32xf32>
    %360 = vector.extract_strided_slice %355 {offsets = [0, 96], sizes = [2, 32], strides = [1, 1]} : vector<2x128xf32> to vector<2x32xf32>
    %361 = arith.mulf %358, %300 : vector<2x32xf32>
    %362 = arith.mulf %357, %359 : vector<2x32xf32>
    %363 = arith.addf %361, %362 : vector<2x32xf32>
    %364 = math.tanh %363 : vector<2x32xf32>
    %365 = arith.mulf %360, %364 : vector<2x32xf32>
    %366 = vector.extract_strided_slice %324 {offsets = [0, 0], sizes = [2, 128], strides = [1, 1]} : vector<2x384xf32> to vector<2x128xf32>
    %c12 = arith.constant 12 : index
    %c0_78 = arith.constant 0 : index
    %367 = vector.load %arg4[%c12, %c0_78] : memref<16x128xf32, #tpu.memory_space<vmem>>, vector<2x128xf32>
    %368 = arith.addf %366, %367 : vector<2x128xf32>
    %cst_79 = arith.constant 5.000000e-01 : f32
    %369 = vector.broadcast %cst_79 : f32 to vector<2x128xf32>
    %370 = arith.mulf %369, %368 : vector<2x128xf32>
    %371 = math.tanh %370 : vector<2x128xf32>
    %cst_80 = arith.constant 1.000000e+00 : f32
    %372 = vector.broadcast %cst_80 : f32 to vector<2x128xf32>
    %373 = arith.addf %371, %372 : vector<2x128xf32>
    %cst_81 = arith.constant 5.000000e-01 : f32
    %374 = vector.broadcast %cst_81 : f32 to vector<2x128xf32>
    %375 = arith.mulf %374, %373 : vector<2x128xf32>
    %376 = math.tanh %368 : vector<2x128xf32>
    %377 = vector.extract_strided_slice %375 {offsets = [0, 0], sizes = [2, 32], strides = [1, 1]} : vector<2x128xf32> to vector<2x32xf32>
    %378 = vector.extract_strided_slice %375 {offsets = [0, 32], sizes = [2, 32], strides = [1, 1]} : vector<2x128xf32> to vector<2x32xf32>
    %379 = vector.extract_strided_slice %376 {offsets = [0, 64], sizes = [2, 32], strides = [1, 1]} : vector<2x128xf32> to vector<2x32xf32>
    %380 = vector.extract_strided_slice %375 {offsets = [0, 96], sizes = [2, 32], strides = [1, 1]} : vector<2x128xf32> to vector<2x32xf32>
    %381 = arith.mulf %378, %320 : vector<2x32xf32>
    %382 = arith.mulf %377, %379 : vector<2x32xf32>
    %383 = arith.addf %381, %382 : vector<2x32xf32>
    %384 = math.tanh %383 : vector<2x32xf32>
    %385 = arith.mulf %380, %384 : vector<2x32xf32>
    %386 = tpu.concatenate %385, %365, %344 in 1 : vector<2x32xf32>, vector<2x32xf32>, vector<2x32xf32> -> vector<2x96xf32>
    %cst_82 = arith.constant dense<0.000000e+00> : vector<2x384xf32>
    %387 = tpu.matmul %386, %9, %cst_82 {dimension_numbers = #tpu.dot_dimension_numbers<[1], [0], [0], [1], [0, 0, 1, 1], [], []>} : vector<2x96xf32>, vector<96x384xf32>, vector<2x384xf32> -> vector<2x384xf32>
    %388 = vector.extract_strided_slice %387 {offsets = [0, 256], sizes = [2, 128], strides = [1, 1]} : vector<2x384xf32> to vector<2x128xf32>
    %389 = vector.broadcast %8 : vector<1x128xf32> to vector<2x128xf32>
    %390 = arith.addf %388, %389 : vector<2x128xf32>
    %cst_83 = arith.constant 5.000000e-01 : f32
    %391 = vector.broadcast %cst_83 : f32 to vector<2x128xf32>
    %392 = arith.mulf %391, %390 : vector<2x128xf32>
    %393 = math.tanh %392 : vector<2x128xf32>
    %cst_84 = arith.constant 1.000000e+00 : f32
    %394 = vector.broadcast %cst_84 : f32 to vector<2x128xf32>
    %395 = arith.addf %393, %394 : vector<2x128xf32>
    %cst_85 = arith.constant 5.000000e-01 : f32
    %396 = vector.broadcast %cst_85 : f32 to vector<2x128xf32>
    %397 = arith.mulf %396, %395 : vector<2x128xf32>
    %398 = math.tanh %390 : vector<2x128xf32>
    %399 = vector.extract_strided_slice %397 {offsets = [0, 0], sizes = [2, 32], strides = [1, 1]} : vector<2x128xf32> to vector<2x32xf32>
    %400 = vector.extract_strided_slice %397 {offsets = [0, 32], sizes = [2, 32], strides = [1, 1]} : vector<2x128xf32> to vector<2x32xf32>
    %401 = vector.extract_strided_slice %398 {offsets = [0, 64], sizes = [2, 32], strides = [1, 1]} : vector<2x128xf32> to vector<2x32xf32>
    %402 = vector.extract_strided_slice %397 {offsets = [0, 96], sizes = [2, 32], strides = [1, 1]} : vector<2x128xf32> to vector<2x32xf32>
    %403 = arith.mulf %400, %342 : vector<2x32xf32>
    %404 = arith.mulf %399, %401 : vector<2x32xf32>
    %405 = arith.addf %403, %404 : vector<2x32xf32>
    %406 = math.tanh %405 : vector<2x32xf32>
    %407 = arith.mulf %402, %406 : vector<2x32xf32>
    %c2_86 = arith.constant 2 : index
    %c0_87 = arith.constant 0 : index
    %408 = vector.load %arg5[%c2_86, %c0_87] : memref<8x32xf32, #tpu.memory_space<vmem>>, vector<2x32xf32>
    tpu.vector_store %arg5[%c2_86, %c0_87], %407 {strides = array<i32>} : memref<8x32xf32, #tpu.memory_space<vmem>>, vector<2x32xf32>,
    %409 = vector.extract_strided_slice %387 {offsets = [0, 128], sizes = [2, 128], strides = [1, 1]} : vector<2x384xf32> to vector<2x128xf32>
    %410 = vector.broadcast %7 : vector<1x128xf32> to vector<2x128xf32>
    %411 = arith.addf %409, %410 : vector<2x128xf32>
    %cst_88 = arith.constant 5.000000e-01 : f32
    %412 = vector.broadcast %cst_88 : f32 to vector<2x128xf32>
    %413 = arith.mulf %412, %411 : vector<2x128xf32>
    %414 = math.tanh %413 : vector<2x128xf32>
    %cst_89 = arith.constant 1.000000e+00 : f32
    %415 = vector.broadcast %cst_89 : f32 to vector<2x128xf32>
    %416 = arith.addf %414, %415 : vector<2x128xf32>
    %cst_90 = arith.constant 5.000000e-01 : f32
    %417 = vector.broadcast %cst_90 : f32 to vector<2x128xf32>
    %418 = arith.mulf %417, %416 : vector<2x128xf32>
    %419 = math.tanh %411 : vector<2x128xf32>
    %420 = vector.extract_strided_slice %418 {offsets = [0, 0], sizes = [2, 32], strides = [1, 1]} : vector<2x128xf32> to vector<2x32xf32>
    %421 = vector.extract_strided_slice %418 {offsets = [0, 32], sizes = [2, 32], strides = [1, 1]} : vector<2x128xf32> to vector<2x32xf32>
    %422 = vector.extract_strided_slice %419 {offsets = [0, 64], sizes = [2, 32], strides = [1, 1]} : vector<2x128xf32> to vector<2x32xf32>
    %423 = vector.extract_strided_slice %418 {offsets = [0, 96], sizes = [2, 32], strides = [1, 1]} : vector<2x128xf32> to vector<2x32xf32>
    %424 = arith.mulf %421, %363 : vector<2x32xf32>
    %425 = arith.mulf %420, %422 : vector<2x32xf32>
    %426 = arith.addf %424, %425 : vector<2x32xf32>
    %427 = math.tanh %426 : vector<2x32xf32>
    %428 = arith.mulf %423, %427 : vector<2x32xf32>
    %429 = vector.extract_strided_slice %387 {offsets = [0, 0], sizes = [2, 128], strides = [1, 1]} : vector<2x384xf32> to vector<2x128xf32>
    %c14 = arith.constant 14 : index
    %c0_91 = arith.constant 0 : index
    %430 = vector.load %arg4[%c14, %c0_91] : memref<16x128xf32, #tpu.memory_space<vmem>>, vector<2x128xf32>
    %431 = arith.addf %429, %430 : vector<2x128xf32>
    %cst_92 = arith.constant 5.000000e-01 : f32
    %432 = vector.broadcast %cst_92 : f32 to vector<2x128xf32>
    %433 = arith.mulf %432, %431 : vector<2x128xf32>
    %434 = math.tanh %433 : vector<2x128xf32>
    %cst_93 = arith.constant 1.000000e+00 : f32
    %435 = vector.broadcast %cst_93 : f32 to vector<2x128xf32>
    %436 = arith.addf %434, %435 : vector<2x128xf32>
    %cst_94 = arith.constant 5.000000e-01 : f32
    %437 = vector.broadcast %cst_94 : f32 to vector<2x128xf32>
    %438 = arith.mulf %437, %436 : vector<2x128xf32>
    %439 = math.tanh %431 : vector<2x128xf32>
    %440 = vector.extract_strided_slice %438 {offsets = [0, 0], sizes = [2, 32], strides = [1, 1]} : vector<2x128xf32> to vector<2x32xf32>
    %441 = vector.extract_strided_slice %438 {offsets = [0, 32], sizes = [2, 32], strides = [1, 1]} : vector<2x128xf32> to vector<2x32xf32>
    %442 = vector.extract_strided_slice %439 {offsets = [0, 64], sizes = [2, 32], strides = [1, 1]} : vector<2x128xf32> to vector<2x32xf32>
    %443 = vector.extract_strided_slice %438 {offsets = [0, 96], sizes = [2, 32], strides = [1, 1]} : vector<2x128xf32> to vector<2x32xf32>
    %444 = arith.mulf %441, %383 : vector<2x32xf32>
    %445 = arith.mulf %440, %442 : vector<2x32xf32>
    %446 = arith.addf %444, %445 : vector<2x32xf32>
    %447 = math.tanh %446 : vector<2x32xf32>
    %448 = arith.mulf %443, %447 : vector<2x32xf32>
    %449 = tpu.concatenate %448, %428, %407 in 1 : vector<2x32xf32>, vector<2x32xf32>, vector<2x32xf32> -> vector<2x96xf32>
    %cst_95 = arith.constant dense<0.000000e+00> : vector<2x384xf32>
    %450 = tpu.matmul %449, %9, %cst_95 {dimension_numbers = #tpu.dot_dimension_numbers<[1], [0], [0], [1], [0, 0, 1, 1], [], []>} : vector<2x96xf32>, vector<96x384xf32>, vector<2x384xf32> -> vector<2x384xf32>
    %451 = vector.extract_strided_slice %450 {offsets = [0, 256], sizes = [2, 128], strides = [1, 1]} : vector<2x384xf32> to vector<2x128xf32>
    %452 = vector.broadcast %8 : vector<1x128xf32> to vector<2x128xf32>
    %453 = arith.addf %451, %452 : vector<2x128xf32>
    %cst_96 = arith.constant 5.000000e-01 : f32
    %454 = vector.broadcast %cst_96 : f32 to vector<2x128xf32>
    %455 = arith.mulf %454, %453 : vector<2x128xf32>
    %456 = math.tanh %455 : vector<2x128xf32>
    %cst_97 = arith.constant 1.000000e+00 : f32
    %457 = vector.broadcast %cst_97 : f32 to vector<2x128xf32>
    %458 = arith.addf %456, %457 : vector<2x128xf32>
    %cst_98 = arith.constant 5.000000e-01 : f32
    %459 = vector.broadcast %cst_98 : f32 to vector<2x128xf32>
    %460 = arith.mulf %459, %458 : vector<2x128xf32>
    %461 = math.tanh %453 : vector<2x128xf32>
    %462 = vector.extract_strided_slice %460 {offsets = [0, 0], sizes = [2, 32], strides = [1, 1]} : vector<2x128xf32> to vector<2x32xf32>
    %463 = vector.extract_strided_slice %460 {offsets = [0, 32], sizes = [2, 32], strides = [1, 1]} : vector<2x128xf32> to vector<2x32xf32>
    %464 = vector.extract_strided_slice %461 {offsets = [0, 64], sizes = [2, 32], strides = [1, 1]} : vector<2x128xf32> to vector<2x32xf32>
    %465 = vector.extract_strided_slice %460 {offsets = [0, 96], sizes = [2, 32], strides = [1, 1]} : vector<2x128xf32> to vector<2x32xf32>
    %466 = arith.mulf %463, %405 : vector<2x32xf32>
    %467 = arith.mulf %462, %464 : vector<2x32xf32>
    %468 = arith.addf %466, %467 : vector<2x32xf32>
    %469 = math.tanh %468 : vector<2x32xf32>
    %470 = arith.mulf %465, %469 : vector<2x32xf32>
    %c4_99 = arith.constant 4 : index
    %c0_100 = arith.constant 0 : index
    %471 = vector.load %arg5[%c4_99, %c0_100] : memref<8x32xf32, #tpu.memory_space<vmem>>, vector<2x32xf32>
    tpu.vector_store %arg5[%c4_99, %c0_100], %470 {strides = array<i32>} : memref<8x32xf32, #tpu.memory_space<vmem>>, vector<2x32xf32>,
    %472 = vector.extract_strided_slice %450 {offsets = [0, 128], sizes = [2, 128], strides = [1, 1]} : vector<2x384xf32> to vector<2x128xf32>
    %473 = vector.broadcast %7 : vector<1x128xf32> to vector<2x128xf32>
    %474 = arith.addf %472, %473 : vector<2x128xf32>
    %cst_101 = arith.constant 5.000000e-01 : f32
    %475 = vector.broadcast %cst_101 : f32 to vector<2x128xf32>
    %476 = arith.mulf %475, %474 : vector<2x128xf32>
    %477 = math.tanh %476 : vector<2x128xf32>
    %cst_102 = arith.constant 1.000000e+00 : f32
    %478 = vector.broadcast %cst_102 : f32 to vector<2x128xf32>
    %479 = arith.addf %477, %478 : vector<2x128xf32>
    %cst_103 = arith.constant 5.000000e-01 : f32
    %480 = vector.broadcast %cst_103 : f32 to vector<2x128xf32>
    %481 = arith.mulf %480, %479 : vector<2x128xf32>
    %482 = math.tanh %474 : vector<2x128xf32>
    %483 = vector.extract_strided_slice %481 {offsets = [0, 0], sizes = [2, 32], strides = [1, 1]} : vector<2x128xf32> to vector<2x32xf32>
    %484 = vector.extract_strided_slice %481 {offsets = [0, 32], sizes = [2, 32], strides = [1, 1]} : vector<2x128xf32> to vector<2x32xf32>
    %485 = vector.extract_strided_slice %482 {offsets = [0, 64], sizes = [2, 32], strides = [1, 1]} : vector<2x128xf32> to vector<2x32xf32>
    %486 = vector.extract_strided_slice %481 {offsets = [0, 96], sizes = [2, 32], strides = [1, 1]} : vector<2x128xf32> to vector<2x32xf32>
    %487 = arith.mulf %484, %426 : vector<2x32xf32>
    %488 = arith.mulf %483, %485 : vector<2x32xf32>
    %489 = arith.addf %487, %488 : vector<2x32xf32>
    %490 = math.tanh %489 : vector<2x32xf32>
    %491 = arith.mulf %486, %490 : vector<2x32xf32>
    %492 = tpu.concatenate %448, %491, %470 in 1 : vector<2x32xf32>, vector<2x32xf32>, vector<2x32xf32> -> vector<2x96xf32>
    %cst_104 = arith.constant dense<0.000000e+00> : vector<2x384xf32>
    %493 = tpu.matmul %492, %9, %cst_104 {dimension_numbers = #tpu.dot_dimension_numbers<[1], [0], [0], [1], [0, 0, 1, 1], [], []>} : vector<2x96xf32>, vector<96x384xf32>, vector<2x384xf32> -> vector<2x384xf32>
    %494 = vector.extract_strided_slice %493 {offsets = [0, 256], sizes = [2, 128], strides = [1, 1]} : vector<2x384xf32> to vector<2x128xf32>
    %495 = vector.broadcast %8 : vector<1x128xf32> to vector<2x128xf32>
    %496 = arith.addf %494, %495 : vector<2x128xf32>
    %cst_105 = arith.constant 5.000000e-01 : f32
    %497 = vector.broadcast %cst_105 : f32 to vector<2x128xf32>
    %498 = arith.mulf %497, %496 : vector<2x128xf32>
    %499 = math.tanh %498 : vector<2x128xf32>
    %cst_106 = arith.constant 1.000000e+00 : f32
    %500 = vector.broadcast %cst_106 : f32 to vector<2x128xf32>
    %501 = arith.addf %499, %500 : vector<2x128xf32>
    %cst_107 = arith.constant 5.000000e-01 : f32
    %502 = vector.broadcast %cst_107 : f32 to vector<2x128xf32>
    %503 = arith.mulf %502, %501 : vector<2x128xf32>
    %504 = math.tanh %496 : vector<2x128xf32>
    %505 = vector.extract_strided_slice %503 {offsets = [0, 0], sizes = [2, 32], strides = [1, 1]} : vector<2x128xf32> to vector<2x32xf32>
    %506 = vector.extract_strided_slice %503 {offsets = [0, 32], sizes = [2, 32], strides = [1, 1]} : vector<2x128xf32> to vector<2x32xf32>
    %507 = vector.extract_strided_slice %504 {offsets = [0, 64], sizes = [2, 32], strides = [1, 1]} : vector<2x128xf32> to vector<2x32xf32>
    %508 = vector.extract_strided_slice %503 {offsets = [0, 96], sizes = [2, 32], strides = [1, 1]} : vector<2x128xf32> to vector<2x32xf32>
    %509 = arith.mulf %506, %468 : vector<2x32xf32>
    %510 = arith.mulf %505, %507 : vector<2x32xf32>
    %511 = arith.addf %509, %510 : vector<2x32xf32>
    %512 = math.tanh %511 : vector<2x32xf32>
    %513 = arith.mulf %508, %512 : vector<2x32xf32>
    %c6_108 = arith.constant 6 : index
    %c0_109 = arith.constant 0 : index
    %514 = vector.load %arg5[%c6_108, %c0_109] : memref<8x32xf32, #tpu.memory_space<vmem>>, vector<2x32xf32>
    tpu.vector_store %arg5[%c6_108, %c0_109], %513 {strides = array<i32>} : memref<8x32xf32, #tpu.memory_space<vmem>>, vector<2x32xf32>,
    %c136 = arith.constant 136 : index
    %c0_110 = arith.constant 0 : index
    %515 = vector.load %arg1[%c136, %c0_110] : memref<168x128xf32, #tpu.memory_space<vmem>>, vector<32x128xf32>
    %c131 = arith.constant 131 : index
    %c0_111 = arith.constant 0 : index
    %516 = vector.load %arg1[%c131, %c0_111] : memref<168x128xf32, #tpu.memory_space<vmem>>, vector<1x128xf32>
    %c0_112 = arith.constant 0 : index
    %c0_113 = arith.constant 0 : index
    %517 = vector.load %arg5[%c0_112, %c0_113] : memref<8x32xf32, #tpu.memory_space<vmem>>, vector<8x32xf32>
    %cst_114 = arith.constant dense<0.000000e+00> : vector<8x128xf32>
    %518 = tpu.matmul %517, %515, %cst_114 {dimension_numbers = #tpu.dot_dimension_numbers<[1], [0], [0], [1], [0, 0, 1, 1], [], []>} : vector<8x32xf32>, vector<32x128xf32>, vector<8x128xf32> -> vector<8x128xf32>
    %519 = vector.broadcast %516 : vector<1x128xf32> to vector<8x128xf32>
    %520 = arith.addf %518, %519 : vector<8x128xf32>
    %521 = vector.extract_strided_slice %520 {offsets = [0, 0], sizes = [8, 8], strides = [1, 1]} : vector<8x128xf32> to vector<8x8xf32>
    %c0_115 = arith.constant 0 : index
    %c0_116 = arith.constant 0 : index
    %522 = vector.load %arg3[%c0_115, %c0_116] : memref<8x8xf32, #tpu.memory_space<vmem>>, vector<8x8xf32>
    tpu.vector_store %arg3[%c0_115, %c0_116], %521 {strides = array<i32>} : memref<8x8xf32, #tpu.memory_space<vmem>>, vector<8x8xf32>,
    return
  }
}

</mosaic_0001>

<llo_original>
// kernel: tpu_custom_call.1
$region0: #{tpu_custom_call.1}
  #allocation0 [shape = 'u32[]', space=smem, size = 0x4, offset = 0x4, fixed_abs, tag = 'smem constant byte address 0x4 - core index']
  #allocation1 [shape = 'u32[144,128]{1,0:T(1,128)}', space=vmem, size = 0x12000, scoped, tag = 'internal scratch']
  #allocation2 [shape = 'f32[16,128]{1,0:T(8,128)}', space=vmem, size = 0x2000, scoped, tag = 'scratch operand']
  #allocation3 [shape = 'f32[8,32]{1,0:T(8,128)}', space=vmem, size = 0x1000, scoped, tag = 'scratch operand']
  %s0 = inlined_call_operand.hbm [shape: f32[16,121], index: 0, kind: input, shape index: {}]
  %s1 = inlined_call_operand.hbm [shape: f32[168,128], index: 1, kind: input, shape index: {}]
  %s2 = inlined_call_operand.hbm [shape: f32[96,384], index: 2, kind: input, shape index: {}]
  %s3 = inlined_call_operand.hbm [shape: f32[8,8], index: 3, kind: output, shape index: {}]
  %s4 = sld [smem:[#allocation0]]
  $region34: #{tpu_custom_call.1} parent=0
    _
  %s6 = ssub.s32 1, %s4
  %s7 = scalar_select 0, %s6, %s4
  $region1: #{tpu_custom_call.1} parent=0
    #allocation4 [shape = 'u8[8192]{0}', space=vmem, size = 0x2000, scoped, tag = 'input window, operand 0, single buffered']
    #allocation5 [shape = 's32[1]{0}', space=sflag, size = 0x4, scoped, tag = 'scoped memory for tpu_custom_call.1']
    #allocation6 [shape = 's32[1]{0}', space=sflag, size = 0x4, scoped, tag = 'scoped memory for tpu_custom_call.1']
    #allocation7 [shape = 'u8[86016]{0}', space=vmem, size = 0x15000, scoped, tag = 'input window, operand 1, single buffered']
    #allocation8 [shape = 's32[1]{0}', space=sflag, size = 0x4, scoped, tag = 'scoped memory for tpu_custom_call.1']
    #allocation9 [shape = 'u8[147456]{0}', space=vmem, size = 0x24000, scoped, tag = 'input window, operand 2, single buffered']
    #allocation10 [shape = 'u8[4096]{0}', space=vmem, size = 0x1000, scoped, tag = 'output window, operand 0, single buffered']
    %8 = vsyncpa [#allocation5], 0
    %9 = vsyncpa [#allocation8], 0
    %10 = vsyncpa [#allocation6], 0
    // Predicated region
    $region2: #{tpu_custom_call.1} parent=1 // pred_check
      _
    $region3: #{tpu_custom_call.1} parent=1 // pred_check_branch
      %12 = sbr.rel (0) target = $region5
    $region4: #{tpu_custom_call.1} parent=1 // pred_region
      %s14 = ssub.s32 256, 256
      %15 = vsyncadd [#allocation5], %s14
      %s16 = sshll.u32 [#allocation4], 4
      %s17 = int_to_ptr.vmem [resolvable:$true] %s16
      %22 = dma.hbm_to_vmem [thread:$0]  %s0, 256, %s17, [#allocation5], 128, 128, 8
    $region5: #{tpu_custom_call.1} parent=1 // pred_fallthru
      _
    // Predicated region
    $region6: #{tpu_custom_call.1} parent=1 // pred_check
      _
    $region7: #{tpu_custom_call.1} parent=1 // pred_check_branch
      %24 = sbr.rel (0) target = $region9
    $region8: #{tpu_custom_call.1} parent=1 // pred_region
      %s26 = ssub.s32 2688, 2688
      %27 = vsyncadd [#allocation8], %s26
      %s28 = sshll.u32 [#allocation7], 4
      %s29 = int_to_ptr.vmem [resolvable:$true] %s28
      %34 = dma.hbm_to_vmem [thread:$0]  %s1, 2688, %s29, [#allocation8], 128, 128, 8
    $region9: #{tpu_custom_call.1} parent=1 // pred_fallthru
      _
    // Predicated region
    $region10: #{tpu_custom_call.1} parent=1 // pred_check
      _
    $region11: #{tpu_custom_call.1} parent=1 // pred_check_branch
      %36 = sbr.rel (0) target = $region13
    $region12: #{tpu_custom_call.1} parent=1 // pred_region
      %s38 = ssub.s32 4608, 4608
      %39 = vsyncadd [#allocation8], %s38
      %s40 = sshll.u32 [#allocation9], 4
      %s41 = int_to_ptr.vmem [resolvable:$true] %s40
      %46 = dma.hbm_to_vmem [thread:$0]  %s2, 4608, %s41, [#allocation8], 384, 384, 24
    $region13: #{tpu_custom_call.1} parent=1 // pred_fallthru
      _
    // Predicated region
    $region14: #{tpu_custom_call.1} parent=1 // pred_check
      _
    $region15: #{tpu_custom_call.1} parent=1 // pred_check_branch
      %48 = sbr.rel (0) target = $region17
    $region16: #{tpu_custom_call.1} parent=1 // pred_region
      %49 = dma.done [#allocation5], 256
    $region17: #{tpu_custom_call.1} parent=1 // pred_fallthru
      _
    // Predicated region
    $region18: #{tpu_custom_call.1} parent=1 // pred_check
      _
    $region19: #{tpu_custom_call.1} parent=1 // pred_check_branch
      %51 = sbr.rel (0) target = $region21
    $region20: #{tpu_custom_call.1} parent=1 // pred_region
      %52 = dma.done [#allocation8], 2688
    $region21: #{tpu_custom_call.1} parent=1 // pred_fallthru
      _
    // Predicated region
    $region22: #{tpu_custom_call.1} parent=1 // pred_check
      _
    $region23: #{tpu_custom_call.1} parent=1 // pred_check_branch
      %54 = sbr.rel (0) target = $region25
    $region24: #{tpu_custom_call.1} parent=1 // pred_region
      %55 = dma.done [#allocation8], 4608
    $region25: #{tpu_custom_call.1} parent=1 // pred_fallthru
      _
    %v56 = vld [vmem:[#allocation7] sm:$0xff]
    %v57 = vld [vmem:[#allocation7 + $0x8] sm:$0xff]
    %v58 = vld [vmem:[#allocation7 + $0x10] sm:$0xff]
    %v59 = vld [vmem:[#allocation7 + $0x18] sm:$0xff]
    %v60 = vld [vmem:[#allocation7 + $0x20] sm:$0xff]
    %v61 = vld [vmem:[#allocation7 + $0x28] sm:$0xff]
    %v62 = vld [vmem:[#allocation7 + $0x30] sm:$0xff]
    %v63 = vld [vmem:[#allocation7 + $0x38] sm:$0xff]
    %v64 = vld [vmem:[#allocation7 + $0x40] sm:$0xff]
    %v65 = vld [vmem:[#allocation7 + $0x48] sm:$0xff]
    %v66 = vld [vmem:[#allocation7 + $0x50] sm:$0xff]
    %v67 = vld [vmem:[#allocation7 + $0x58] sm:$0xff]
    %v68 = vld [vmem:[#allocation7 + $0x60] sm:$0xff]
    %v69 = vld [vmem:[#allocation7 + $0x68] sm:$0xff]
    %v70 = vld [vmem:[#allocation7 + $0x70] sm:$0xff]
    %v71 = vld [vmem:[#allocation7 + $0x78] sm:$0x1]
    %v72 = vld [vmem:[#allocation7 + $0x80] sm:$0x1]
    %v73 = vld [vmem:[#allocation4] sm:$0xff]
    %v74 = vld [vmem:[#allocation4 + $0x8] sm:$0xff]
    %v75 = vlaneseq
    %v76 = vshrl.u32 %v75, 7
    %v77 = vsub.s32 0, %v76
    %v78 = vrot.slane %v72, %v77
    %vm79 = vcmask 990208
    %v81 = vsel %vm79, %v73, 0
    %v84 = vsel %vm79, %v74, 0
    %vm86 = vcmask 1040384
    %v88 = vsel %vm86, %v71, 0
    %90 = vmatprep.subr.mxu0 0.0
    %91 = vmatpush1.msra.mxu0 %v88
    %92 = vmatprep.subr.mxu0 0.0
    %93 = vmatpush1.msra.mxu0 %v70
    %94 = vmatprep.subr.mxu0 0.0
    %95 = vmatpush1.msra.mxu0 %v69
    %96 = vmatprep.subr.mxu0 0.0
    %97 = vmatpush1.msra.mxu0 %v68
    %98 = vmatprep.subr.mxu0 0.0
    %99 = vmatpush1.msra.mxu0 %v67
    %100 = vmatprep.subr.mxu0 0.0
    %101 = vmatpush1.msra.mxu0 %v66
    %102 = vmatprep.subr.mxu0 0.0
    %103 = vmatpush1.msra.mxu0 %v65
    %104 = vmatprep.subr.mxu0 0.0
    %105 = vmatpush1.msra.mxu0 %v64
    %106 = vmatprep.subr.mxu0 0.0
    %107 = vmatpush1.msra.mxu0 %v63
    %108 = vmatprep.subr.mxu0 0.0
    %109 = vmatpush1.msra.mxu0 %v62
    %110 = vmatprep.subr.mxu0 0.0
    %111 = vmatpush1.msra.mxu0 %v61
    %112 = vmatprep.subr.mxu0 0.0
    %113 = vmatpush1.msra.mxu0 %v60
    %114 = vmatprep.subr.mxu0 0.0
    %115 = vmatpush1.msra.mxu0 %v59
    %116 = vmatprep.subr.mxu0 0.0
    %117 = vmatpush1.msra.mxu0 %v58
    %118 = vmatprep.subr.mxu0 0.0
    %119 = vmatpush1.msra.mxu0 %v57
    %120 = vmatprep.subr.mxu0 0.0
    %121 = vmatpush1.msra.mxu0 %v56
    %122 = vmatprep.subr.mxu0 0.0
    %123 = vmatpush2.msra.mxu0 0.0
    %124 = vmatprep.subr.mxu0 0.0
    %125 = vmatpush2.msra.mxu0 0.0
    %126 = vmatprep.subr.mxu0 0.0
    %127 = vmatpush2.msra.mxu0 0.0
    %128 = vmatprep.subr.mxu0 0.0
    %129 = vmatpush2.msra.mxu0 0.0
    %130 = vmatprep.subr.mxu0 0.0
    %131 = vmatpush2.msra.mxu0 0.0
    %132 = vmatprep.subr.mxu0 0.0
    %133 = vmatpush2.msra.mxu0 0.0
    %134 = vmatprep.subr.mxu0 0.0
    %135 = vmatpush2.msra.mxu0 0.0
    %136 = vmatprep.subr.mxu0 0.0
    %137 = vmatpush2.msra.mxu0 0.0
    %138 = vmatprep.subr.mxu0 0.0
    %139 = vmatpush2.msra.mxu0 0.0
    %140 = vmatprep.subr.mxu0 0.0
    %141 = vmatpush2.msra.mxu0 0.0
    %142 = vmatprep.subr.mxu0 0.0
    %143 = vmatpush2.msra.mxu0 0.0
    %144 = vmatprep.subr.mxu0 0.0
    %145 = vmatpush2.msra.mxu0 0.0
    %146 = vmatprep.subr.mxu0 0.0
    %147 = vmatpush2.msra.mxu0 0.0
    %148 = vmatprep.subr.mxu0 0.0
    %149 = vmatpush2.msra.mxu0 0.0
    %150 = vmatprep.subr.mxu0 0.0
    %151 = vmatpush2.msra.mxu0 0.0
    %152 = vmatprep.subr.mxu0 0.0
    %153 = vmatpush2.msra.mxu0 0.0
    %154 = vmatprep.mubr.f32.mxu0 0.0
    %155 = vmatmul.mubr.f32.gmra.mxu0 %v81
    %v156 = vpop.f32.mrf.mxu0
    %v157 = vadd.f32 %v78, %v156
    %v158 = vpop.f32.mrf.mxu0
    %159 = vmatprep.mubr.f32.mxu0 0.0
    %160 = vmatmul.mubr.f32.gmra.mxu0 %v84
    %v161 = vpop.f32.mrf.mxu0
    %v162 = vadd.f32 %v78, %v161
    %v163 = vpop.f32.mrf.mxu0
    %164 = vdwg.mxu0
    %165 = vst [vmem:[#allocation2] sm:$0xff] %v157
    %166 = vst [vmem:[#allocation2 + $0x8] sm:$0xff] %v162
    %v167 = vld [vmem:[#allocation7 + $0x81] sm:$0x1]
    %v168 = vld [vmem:[#allocation7 + $0x82] sm:$0x1]
    %v169 = vld [vmem:[#allocation9] sm:$0xff]
    %v170 = vld [vmem:[#allocation9 + $0x8] sm:$0xff]
    %v171 = vld [vmem:[#allocation9 + $0x10] sm:$0xff]
    %v172 = vld [vmem:[#allocation9 + $0x18] sm:$0xff]
    %v173 = vld [vmem:[#allocation9 + $0x20] sm:$0xff]
    %v174 = vld [vmem:[#allocation9 + $0x28] sm:$0xff]
    %v175 = vld [vmem:[#allocation9 + $0x30] sm:$0xff]
    %v176 = vld [vmem:[#allocation9 + $0x38] sm:$0xff]
    %v177 = vld [vmem:[#allocation9 + $0x40] sm:$0xff]
    %v178 = vld [vmem:[#allocation9 + $0x48] sm:$0xff]
    %v179 = vld [vmem:[#allocation9 + $0x50] sm:$0xff]
    %v180 = vld [vmem:[#allocation9 + $0x58] sm:$0xff]
    %v181 = vld [vmem:[#allocation9 + $0x60] sm:$0xff]
    %v182 = vld [vmem:[#allocation9 + $0x68] sm:$0xff]
    %v183 = vld [vmem:[#allocation9 + $0x70] sm:$0xff]
    %v184 = vld [vmem:[#allocation9 + $0x78] sm:$0xff]
    %v185 = vld [vmem:[#allocation9 + $0x80] sm:$0xff]
    %v186 = vld [vmem:[#allocation9 + $0x88] sm:$0xff]
    %v187 = vld [vmem:[#allocation9 + $0x90] sm:$0xff]
    %v188 = vld [vmem:[#allocation9 + $0x98] sm:$0xff]
    %v189 = vld [vmem:[#allocation9 + $0xa0] sm:$0xff]
    %v190 = vld [vmem:[#allocation9 + $0xa8] sm:$0xff]
    %v191 = vld [vmem:[#allocation9 + $0xb0] sm:$0xff]
    %v192 = vld [vmem:[#allocation9 + $0xb8] sm:$0xff]
    %v193 = vld [vmem:[#allocation9 + $0xc0] sm:$0xff]
    %v194 = vld [vmem:[#allocation9 + $0xc8] sm:$0xff]
    %v195 = vld [vmem:[#allocation9 + $0xd0] sm:$0xff]
    %v196 = vld [vmem:[#allocation9 + $0xd8] sm:$0xff]
    %v197 = vld [vmem:[#allocation9 + $0xe0] sm:$0xff]
    %v198 = vld [vmem:[#allocation9 + $0xe8] sm:$0xff]
    %v199 = vld [vmem:[#allocation9 + $0xf0] sm:$0xff]
    %v200 = vld [vmem:[#allocation9 + $0xf8] sm:$0xff]
    %v201 = vld [vmem:[#allocation9 + $0x100] sm:$0xff]
    %v202 = vld [vmem:[#allocation9 + $0x108] sm:$0xff]
    %v203 = vld [vmem:[#allocation9 + $0x110] sm:$0xff]
    %v204 = vld [vmem:[#allocation9 + $0x118] sm:$0xff]
    %vm205 = vcmask 785408
    %v207 = vsel %vm205, 0.0, 0
    %209 = vmatprep.subr.mxu0 0.0
    %210 = vmatpush1.msra.mxu0 0.0
    %211 = vmatprep.subr.mxu0 0.0
    %212 = vmatpush1.msra.mxu0 0.0
    %213 = vmatprep.subr.mxu0 0.0
    %214 = vmatpush1.msra.mxu0 0.0
    %215 = vmatprep.subr.mxu0 0.0
    %216 = vmatpush1.msra.mxu0 0.0
    %217 = vmatprep.subr.mxu0 %v203
    %218 = vmatpush1.msra.mxu0 %v202
    %219 = vmatprep.subr.mxu0 %v200
    %220 = vmatpush1.msra.mxu0 %v199
    %221 = vmatprep.subr.mxu0 %v197
    %222 = vmatpush1.msra.mxu0 %v196
    %223 = vmatprep.subr.mxu0 %v194
    %224 = vmatpush1.msra.mxu0 %v193
    %225 = vmatprep.subr.mxu0 %v191
    %226 = vmatpush1.msra.mxu0 %v190
    %227 = vmatprep.subr.mxu0 %v188
    %228 = vmatpush1.msra.mxu0 %v187
    %229 = vmatprep.subr.mxu0 %v185
    %230 = vmatpush1.msra.mxu0 %v184
    %231 = vmatprep.subr.mxu0 %v182
    %232 = vmatpush1.msra.mxu0 %v181
    %233 = vmatprep.subr.mxu0 %v179
    %234 = vmatpush1.msra.mxu0 %v178
    %235 = vmatprep.subr.mxu0 %v176
    %236 = vmatpush1.msra.mxu0 %v175
    %237 = vmatprep.subr.mxu0 %v173
    %238 = vmatpush1.msra.mxu0 %v172
    %239 = vmatprep.subr.mxu0 %v170
    %240 = vmatpush1.msra.mxu0 %v169
    %241 = vmatprep.subr.mxu0 0.0
    %242 = vmatpush2.msra.mxu0 0.0
    %243 = vmatprep.subr.mxu0 0.0
    %244 = vmatpush2.msra.mxu0 0.0
    %245 = vmatprep.subr.mxu0 0.0
    %246 = vmatpush2.msra.mxu0 0.0
    %247 = vmatprep.subr.mxu0 0.0
    %248 = vmatpush2.msra.mxu0 0.0
    %249 = vmatprep.subr.mxu0 0.0
    %250 = vmatpush2.msra.mxu0 0.0
    %251 = vmatprep.subr.mxu0 0.0
    %252 = vmatpush2.msra.mxu0 0.0
    %253 = vmatprep.subr.mxu0 0.0
    %254 = vmatpush2.msra.mxu0 0.0
    %255 = vmatprep.subr.mxu0 0.0
    %256 = vmatpush2.msra.mxu0 0.0
    %257 = vmatprep.subr.mxu0 0.0
    %258 = vmatpush2.msra.mxu0 0.0
    %259 = vmatprep.subr.mxu0 0.0
    %260 = vmatpush2.msra.mxu0 0.0
    %261 = vmatprep.subr.mxu0 0.0
    %262 = vmatpush2.msra.mxu0 0.0
    %263 = vmatprep.subr.mxu0 0.0
    %264 = vmatpush2.msra.mxu0 0.0
    %265 = vmatprep.subr.mxu0 0.0
    %266 = vmatpush2.msra.mxu0 0.0
    %267 = vmatprep.subr.mxu0 0.0
    %268 = vmatpush2.msra.mxu0 0.0
    %269 = vmatprep.subr.mxu0 0.0
    %270 = vmatpush2.msra.mxu0 0.0
    %271 = vmatprep.subr.mxu0 0.0
    %272 = vmatpush2.msra.mxu0 0.0
    %273 = vmatprep.mubr.f32.mxu0 0.0
    %274 = vmatmul.mubr.f32.gmra.mxu0 %v207
    %v275 = vpop.f32.mrf.mxu0
    %v276 = vadd.f32 0.0, %v275
    %v277 = vpop.f32.mrf.mxu0
    %278 = vdwg.mxu0
    %v279 = vld [vmem:[#allocation2] sm:$0x3]
    %v280 = vadd.f32 %v276, %v279
    %v281 = vmul.f32 %v280, 0.5
    %v282 = vtanh.pop %v281
    %v283 = vadd.f32 %v282, 1.0
    %v284 = vmul.f32 %v283, 0.5
    %v285 = vtanh.pop %v280
    %v286 = vmul.f32 %v284, 0.0
    %288 = vrot.lane.b32.xlu0 %v285, 64
    %v289 = vpop.permute.xlu0 %288
    %v291 = vmul.f32 %v284, %v289
    %293 = vrot.lane.b32.xlu0 %v291, 32
    %v294 = vpop.permute.xlu0 %293
    %v296 = vadd.f32 %v286, %v294
    %v297 = vtanh.pop %v296
    %299 = vrot.lane.b32.xlu0 %v297, 64
    %v300 = vpop.permute.xlu0 %299
    %v302 = vmul.f32 %v284, %v300
    %304 = vrot.lane.b32.xlu0 %v302, 32
    %v305 = vpop.permute.xlu0 %304
    %vm307 = vcmask 261120
    %v308 = vsel %vm307, %v305, 0.0
    %vm309 = vcmask 523264
    %v310 = vsel %vm309, %v308, 0.0
    %v312 = vsel %vm205, %v310, 0
    %314 = vmatprep.subr.mxu0 0.0
    %315 = vmatpush1.msra.mxu0 0.0
    %316 = vmatprep.subr.mxu0 0.0
    %317 = vmatpush1.msra.mxu0 0.0
    %318 = vmatprep.subr.mxu0 0.0
    %319 = vmatpush1.msra.mxu0 0.0
    %320 = vmatprep.subr.mxu0 0.0
    %321 = vmatpush1.msra.mxu0 0.0
    %322 = vmatprep.subr.mxu0 %v203
    %323 = vmatpush1.msra.mxu0 %v202
    %324 = vmatprep.subr.mxu0 %v200
    %325 = vmatpush1.msra.mxu0 %v199
    %326 = vmatprep.subr.mxu0 %v197
    %327 = vmatpush1.msra.mxu0 %v196
    %328 = vmatprep.subr.mxu0 %v194
    %329 = vmatpush1.msra.mxu0 %v193
    %330 = vmatprep.subr.mxu0 %v191
    %331 = vmatpush1.msra.mxu0 %v190
    %332 = vmatprep.subr.mxu0 %v188
    %333 = vmatpush1.msra.mxu0 %v187
    %334 = vmatprep.subr.mxu0 %v185
    %335 = vmatpush1.msra.mxu0 %v184
    %336 = vmatprep.subr.mxu0 %v182
    %337 = vmatpush1.msra.mxu0 %v181
    %338 = vmatprep.subr.mxu0 %v179
    %339 = vmatpush1.msra.mxu0 %v178
    %340 = vmatprep.subr.mxu0 %v176
    %341 = vmatpush1.msra.mxu0 %v175
    %342 = vmatprep.subr.mxu0 %v173
    %343 = vmatpush1.msra.mxu0 %v172
    %344 = vmatprep.subr.mxu0 %v170
    %345 = vmatpush1.msra.mxu0 %v169
    %346 = vmatprep.subr.mxu0 0.0
    %347 = vmatpush2.msra.mxu0 0.0
    %348 = vmatprep.subr.mxu0 0.0
    %349 = vmatpush2.msra.mxu0 0.0
    %350 = vmatprep.subr.mxu0 0.0
    %351 = vmatpush2.msra.mxu0 0.0
    %352 = vmatprep.subr.mxu0 0.0
    %353 = vmatpush2.msra.mxu0 0.0
    %354 = vmatprep.subr.mxu0 0.0
    %355 = vmatpush2.msra.mxu0 0.0
    %356 = vmatprep.subr.mxu0 0.0
    %357 = vmatpush2.msra.mxu0 0.0
    %358 = vmatprep.subr.mxu0 0.0
    %359 = vmatpush2.msra.mxu0 0.0
    %360 = vmatprep.subr.mxu0 0.0
    %361 = vmatpush2.msra.mxu0 0.0
    %362 = vmatprep.subr.mxu0 0.0
    %363 = vmatpush2.msra.mxu0 0.0
    %364 = vmatprep.subr.mxu0 0.0
    %365 = vmatpush2.msra.mxu0 0.0
    %366 = vmatprep.subr.mxu0 0.0
    %367 = vmatpush2.msra.mxu0 0.0
    %368 = vmatprep.subr.mxu0 0.0
    %369 = vmatpush2.msra.mxu0 0.0
    %370 = vmatprep.subr.mxu0 0.0
    %371 = vmatpush2.msra.mxu0 0.0
    %372 = vmatprep.subr.mxu0 0.0
    %373 = vmatpush2.msra.mxu0 0.0
    %374 = vmatprep.subr.mxu0 0.0
    %375 = vmatpush2.msra.mxu0 0.0
    %376 = vmatprep.subr.mxu0 0.0
    %377 = vmatpush2.msra.mxu0 0.0
    %378 = vmatprep.mubr.f32.mxu0 0.0
    %379 = vmatmul.mubr.f32.gmra.mxu0 %v312
    %v380 = vpop.f32.mrf.mxu0
    %v381 = vadd.f32 0.0, %v380
    %v382 = vpop.f32.mrf.mxu0
    %v383 = vadd.f32 0.0, %v382
    %384 = vdwg.mxu0
    %v385 = vlaneseq
    %v386 = vshrl.u32 %v385, 7
    %v387 = vsub.s32 0, %v386
    %v388 = vrot.slane %v167, %v387
    %v389 = vadd.f32 %v383, %v388
    %v390 = vmul.f32 %v389, 0.5
    %v391 = vtanh.pop %v390
    %v392 = vadd.f32 %v391, 1.0
    %v393 = vmul.f32 %v392, 0.5
    %v394 = vtanh.pop %v389
    %v395 = vmul.f32 %v393, 0.0
    %397 = vrot.lane.b32.xlu0 %v394, 64
    %v398 = vpop.permute.xlu0 %397
    %v400 = vmul.f32 %v393, %v398
    %402 = vrot.lane.b32.xlu0 %v400, 32
    %v403 = vpop.permute.xlu0 %402
    %v405 = vadd.f32 %v395, %v403
    %v406 = vtanh.pop %v405
    %408 = vrot.lane.b32.xlu0 %v406, 64
    %v409 = vpop.permute.xlu0 %408
    %v411 = vmul.f32 %v393, %v409
    %v412 = vld [vmem:[#allocation2 + $0x2] sm:$0x3]
    %v413 = vadd.f32 %v381, %v412
    %v414 = vmul.f32 %v413, 0.5
    %v415 = vtanh.pop %v414
    %v416 = vadd.f32 %v415, 1.0
    %v417 = vmul.f32 %v416, 0.5
    %v418 = vtanh.pop %v413
    %v419 = vmul.f32 %v417, %v296
    %421 = vrot.lane.b32.xlu0 %v418, 64
    %v422 = vpop.permute.xlu0 %421
    %v424 = vmul.f32 %v417, %v422
    %426 = vrot.lane.b32.xlu0 %v424, 32
    %v427 = vpop.permute.xlu0 %426
    %v429 = vadd.f32 %v419, %v427
    %v430 = vtanh.pop %v429
    %432 = vrot.lane.b32.xlu0 %v430, 64
    %v433 = vpop.permute.xlu0 %432
    %v435 = vmul.f32 %v417, %v433
    %437 = vrot.lane.b32.xlu0 %v435, 32
    %v438 = vpop.permute.xlu0 %437
    %441 = vrot.lane.b32.xlu0 %v411, 64
    %v442 = vpop.permute.xlu0 %441
    %v444 = vsel %vm307, %v438, %v442
    %v445 = vsel %vm309, %v444, 0.0
    %v447 = vsel %vm205, %v445, 0
    %449 = vmatprep.subr.mxu0 0.0
    %450 = vmatpush1.msra.mxu0 0.0
    %451 = vmatprep.subr.mxu0 0.0
    %452 = vmatpush1.msra.mxu0 0.0
    %453 = vmatprep.subr.mxu0 0.0
    %454 = vmatpush1.msra.mxu0 0.0
    %455 = vmatprep.subr.mxu0 0.0
    %456 = vmatpush1.msra.mxu0 0.0
    %457 = vmatprep.subr.mxu0 %v203
    %458 = vmatpush1.msra.mxu0 %v202
    %459 = vmatprep.subr.mxu0 %v200
    %460 = vmatpush1.msra.mxu0 %v199
    %461 = vmatprep.subr.mxu0 %v197
    %462 = vmatpush1.msra.mxu0 %v196
    %463 = vmatprep.subr.mxu0 %v194
    %464 = vmatpush1.msra.mxu0 %v193
    %465 = vmatprep.subr.mxu0 %v191
    %466 = vmatpush1.msra.mxu0 %v190
    %467 = vmatprep.subr.mxu0 %v188
    %468 = vmatpush1.msra.mxu0 %v187
    %469 = vmatprep.subr.mxu0 %v185
    %470 = vmatpush1.msra.mxu0 %v184
    %471 = vmatprep.subr.mxu0 %v182
    %472 = vmatpush1.msra.mxu0 %v181
    %473 = vmatprep.subr.mxu0 %v179
    %474 = vmatpush1.msra.mxu0 %v178
    %475 = vmatprep.subr.mxu0 %v176
    %476 = vmatpush1.msra.mxu0 %v175
    %477 = vmatprep.subr.mxu0 %v173
    %478 = vmatpush1.msra.mxu0 %v172
    %479 = vmatprep.subr.mxu0 %v170
    %480 = vmatpush1.msra.mxu0 %v169
    %481 = vmatprep.subr.mxu0 0.0
    %482 = vmatpush2.msra.mxu0 0.0
    %483 = vmatprep.subr.mxu0 0.0
    %484 = vmatpush2.msra.mxu0 0.0
    %485 = vmatprep.subr.mxu0 0.0
    %486 = vmatpush2.msra.mxu0 0.0
    %487 = vmatprep.subr.mxu0 0.0
    %488 = vmatpush2.msra.mxu0 0.0
    %489 = vmatprep.subr.mxu0 0.0
    %490 = vmatpush2.msra.mxu0 0.0
    %491 = vmatprep.subr.mxu0 0.0
    %492 = vmatpush2.msra.mxu0 0.0
    %493 = vmatprep.subr.mxu0 0.0
    %494 = vmatpush2.msra.mxu0 0.0
    %495 = vmatprep.subr.mxu0 0.0
    %496 = vmatpush2.msra.mxu0 0.0
    %497 = vmatprep.subr.mxu0 0.0
    %498 = vmatpush2.msra.mxu0 0.0
    %499 = vmatprep.subr.mxu0 0.0
    %500 = vmatpush2.msra.mxu0 0.0
    %501 = vmatprep.subr.mxu0 0.0
    %502 = vmatpush2.msra.mxu0 0.0
    %503 = vmatprep.subr.mxu0 0.0
    %504 = vmatpush2.msra.mxu0 0.0
    %505 = vmatprep.subr.mxu0 0.0
    %506 = vmatpush2.msra.mxu0 0.0
    %507 = vmatprep.subr.mxu0 0.0
    %508 = vmatpush2.msra.mxu0 0.0
    %509 = vmatprep.subr.mxu0 0.0
    %510 = vmatpush2.msra.mxu0 0.0
    %511 = vmatprep.subr.mxu0 0.0
    %512 = vmatpush2.msra.mxu0 0.0
    %513 = vmatprep.mubr.f32.mxu0 0.0
    %514 = vmatmul.mubr.f32.gmra.mxu0 %v447
    %v515 = vpop.f32.mrf.mxu0
    %v516 = vadd.f32 0.0, %v515
    %v517 = vpop.f32.mrf.mxu0
    %v518 = vadd.f32 0.0, %v517
    %519 = vdwg.mxu0
    %520 = vmatprep.subr.mxu0 0.0
    %521 = vmatpush1.msra.mxu0 0.0
    %522 = vmatprep.subr.mxu0 0.0
    %523 = vmatpush1.msra.mxu0 0.0
    %524 = vmatprep.subr.mxu0 0.0
    %525 = vmatpush1.msra.mxu0 0.0
    %526 = vmatprep.subr.mxu0 0.0
    %527 = vmatpush1.msra.mxu0 0.0
    %528 = vmatprep.subr.mxu0 0.0
    %529 = vmatpush1.msra.mxu0 %v204
    %530 = vmatprep.subr.mxu0 0.0
    %531 = vmatpush1.msra.mxu0 %v201
    %532 = vmatprep.subr.mxu0 0.0
    %533 = vmatpush1.msra.mxu0 %v198
    %534 = vmatprep.subr.mxu0 0.0
    %535 = vmatpush1.msra.mxu0 %v195
    %536 = vmatprep.subr.mxu0 0.0
    %537 = vmatpush1.msra.mxu0 %v192
    %538 = vmatprep.subr.mxu0 0.0
    %539 = vmatpush1.msra.mxu0 %v189
    %540 = vmatprep.subr.mxu0 0.0
    %541 = vmatpush1.msra.mxu0 %v186
    %542 = vmatprep.subr.mxu0 0.0
    %543 = vmatpush1.msra.mxu0 %v183
    %544 = vmatprep.subr.mxu0 0.0
    %545 = vmatpush1.msra.mxu0 %v180
    %546 = vmatprep.subr.mxu0 0.0
    %547 = vmatpush1.msra.mxu0 %v177
    %548 = vmatprep.subr.mxu0 0.0
    %549 = vmatpush1.msra.mxu0 %v174
    %550 = vmatprep.subr.mxu0 0.0
    %551 = vmatpush1.msra.mxu0 %v171
    %552 = vmatprep.subr.mxu0 0.0
    %553 = vmatpush2.msra.mxu0 0.0
    %554 = vmatprep.subr.mxu0 0.0
    %555 = vmatpush2.msra.mxu0 0.0
    %556 = vmatprep.subr.mxu0 0.0
    %557 = vmatpush2.msra.mxu0 0.0
    %558 = vmatprep.subr.mxu0 0.0
    %559 = vmatpush2.msra.mxu0 0.0
    %560 = vmatprep.subr.mxu0 0.0
    %561 = vmatpush2.msra.mxu0 0.0
    %562 = vmatprep.subr.mxu0 0.0
    %563 = vmatpush2.msra.mxu0 0.0
    %564 = vmatprep.subr.mxu0 0.0
    %565 = vmatpush2.msra.mxu0 0.0
    %566 = vmatprep.subr.mxu0 0.0
    %567 = vmatpush2.msra.mxu0 0.0
    %568 = vmatprep.subr.mxu0 0.0
    %569 = vmatpush2.msra.mxu0 0.0
    %570 = vmatprep.subr.mxu0 0.0
    %571 = vmatpush2.msra.mxu0 0.0
    %572 = vmatprep.subr.mxu0 0.0
    %573 = vmatpush2.msra.mxu0 0.0
    %574 = vmatprep.subr.mxu0 0.0
    %575 = vmatpush2.msra.mxu0 0.0
    %576 = vmatprep.subr.mxu0 0.0
    %577 = vmatpush2.msra.mxu0 0.0
    %578 = vmatprep.subr.mxu0 0.0
    %579 = vmatpush2.msra.mxu0 0.0
    %580 = vmatprep.subr.mxu0 0.0
    %581 = vmatpush2.msra.mxu0 0.0
    %582 = vmatprep.subr.mxu0 0.0
    %583 = vmatpush2.msra.mxu0 0.0
    %584 = vmatprep.mubr.f32.mxu0 0.0
    %585 = vmatmul.mubr.f32.gmra.mxu0 %v447
    %v586 = vpop.f32.mrf.mxu0
    %v587 = vadd.f32 0.0, %v586
    %v588 = vpop.f32.mrf.mxu0
    %589 = vdwg.mxu0
    %v590 = vlaneseq
    %v591 = vshrl.u32 %v590, 7
    %v592 = vsub.s32 0, %v591
    %v593 = vrot.slane %v168, %v592
    %v594 = vadd.f32 %v587, %v593
    %v595 = vmul.f32 %v594, 0.5
    %v596 = vtanh.pop %v595
    %v597 = vadd.f32 %v596, 1.0
    %v598 = vmul.f32 %v597, 0.5
    %v599 = vtanh.pop %v594
    %v600 = vmul.f32 %v598, 0.0
    %602 = vrot.lane.b32.xlu0 %v599, 64
    %v603 = vpop.permute.xlu0 %602
    %v605 = vmul.f32 %v598, %v603
    %607 = vrot.lane.b32.xlu0 %v605, 32
    %v608 = vpop.permute.xlu0 %607
    %v610 = vadd.f32 %v600, %v608
    %v611 = vtanh.pop %v610
    %613 = vrot.lane.b32.xlu0 %v611, 64
    %v614 = vpop.permute.xlu0 %613
    %v616 = vmul.f32 %v598, %v614
    %v617 = vadd.f32 %v518, %v388
    %v618 = vmul.f32 %v617, 0.5
    %v619 = vtanh.pop %v618
    %v620 = vadd.f32 %v619, 1.0
    %v621 = vmul.f32 %v620, 0.5
    %v622 = vtanh.pop %v617
    %v623 = vmul.f32 %v621, %v405
    %625 = vrot.lane.b32.xlu0 %v622, 64
    %v626 = vpop.permute.xlu0 %625
    %v628 = vmul.f32 %v621, %v626
    %630 = vrot.lane.b32.xlu0 %v628, 32
    %v631 = vpop.permute.xlu0 %630
    %v633 = vadd.f32 %v623, %v631
    %v634 = vtanh.pop %v633
    %636 = vrot.lane.b32.xlu0 %v634, 64
    %v637 = vpop.permute.xlu0 %636
    %v639 = vmul.f32 %v621, %v637
    %v640 = vld [vmem:[#allocation2 + $0x4] sm:$0x3]
    %v641 = vadd.f32 %v516, %v640
    %v642 = vmul.f32 %v641, 0.5
    %v643 = vtanh.pop %v642
    %v644 = vadd.f32 %v643, 1.0
    %v645 = vmul.f32 %v644, 0.5
    %v646 = vtanh.pop %v641
    %v647 = vmul.f32 %v645, %v429
    %649 = vrot.lane.b32.xlu0 %v646, 64
    %v650 = vpop.permute.xlu0 %649
    %v652 = vmul.f32 %v645, %v650
    %654 = vrot.lane.b32.xlu0 %v652, 32
    %v655 = vpop.permute.xlu0 %654
    %v657 = vadd.f32 %v647, %v655
    %v658 = vtanh.pop %v657
    %660 = vrot.lane.b32.xlu0 %v658, 64
    %v661 = vpop.permute.xlu0 %660
    %v663 = vmul.f32 %v645, %v661
    %665 = vrot.lane.b32.xlu0 %v663, 32
    %v666 = vpop.permute.xlu0 %665
    %669 = vrot.lane.b32.xlu0 %v639, 64
    %v670 = vpop.permute.xlu0 %669
    %673 = vrot.lane.b32.xlu0 %v616, 96
    %v674 = vpop.permute.xlu0 %673
    %v676 = vsel %vm307, %v666, %v670
    %v677 = vsel %vm309, %v676, %v674
    %v679 = vsel %vm205, %v677, 0
    %681 = vmatprep.subr.mxu0 0.0
    %682 = vmatpush1.msra.mxu0 0.0
    %683 = vmatprep.subr.mxu0 0.0
    %684 = vmatpush1.msra.mxu0 0.0
    %685 = vmatprep.subr.mxu0 0.0
    %686 = vmatpush1.msra.mxu0 0.0
    %687 = vmatprep.subr.mxu0 0.0
    %688 = vmatpush1.msra.mxu0 0.0
    %689 = vmatprep.subr.mxu0 %v203
    %690 = vmatpush1.msra.mxu0 %v202
    %691 = vmatprep.subr.mxu0 %v200
    %692 = vmatpush1.msra.mxu0 %v199
    %693 = vmatprep.subr.mxu0 %v197
    %694 = vmatpush1.msra.mxu0 %v196
    %695 = vmatprep.subr.mxu0 %v194
    %696 = vmatpush1.msra.mxu0 %v193
    %697 = vmatprep.subr.mxu0 %v191
    %698 = vmatpush1.msra.mxu0 %v190
    %699 = vmatprep.subr.mxu0 %v188
    %700 = vmatpush1.msra.mxu0 %v187
    %701 = vmatprep.subr.mxu0 %v185
    %702 = vmatpush1.msra.mxu0 %v184
    %703 = vmatprep.subr.mxu0 %v182
    %704 = vmatpush1.msra.mxu0 %v181
    %705 = vmatprep.subr.mxu0 %v179
    %706 = vmatpush1.msra.mxu0 %v178
    %707 = vmatprep.subr.mxu0 %v176
    %708 = vmatpush1.msra.mxu0 %v175
    %709 = vmatprep.subr.mxu0 %v173
    %710 = vmatpush1.msra.mxu0 %v172
    %711 = vmatprep.subr.mxu0 %v170
    %712 = vmatpush1.msra.mxu0 %v169
    %713 = vmatprep.subr.mxu0 0.0
    %714 = vmatpush2.msra.mxu0 0.0
    %715 = vmatprep.subr.mxu0 0.0
    %716 = vmatpush2.msra.mxu0 0.0
    %717 = vmatprep.subr.mxu0 0.0
    %718 = vmatpush2.msra.mxu0 0.0
    %719 = vmatprep.subr.mxu0 0.0
    %720 = vmatpush2.msra.mxu0 0.0
    %721 = vmatprep.subr.mxu0 0.0
    %722 = vmatpush2.msra.mxu0 0.0
    %723 = vmatprep.subr.mxu0 0.0
    %724 = vmatpush2.msra.mxu0 0.0
    %725 = vmatprep.subr.mxu0 0.0
    %726 = vmatpush2.msra.mxu0 0.0
    %727 = vmatprep.subr.mxu0 0.0
    %728 = vmatpush2.msra.mxu0 0.0
    %729 = vmatprep.subr.mxu0 0.0
    %730 = vmatpush2.msra.mxu0 0.0
    %731 = vmatprep.subr.mxu0 0.0
    %732 = vmatpush2.msra.mxu0 0.0
    %733 = vmatprep.subr.mxu0 0.0
    %734 = vmatpush2.msra.mxu0 0.0
    %735 = vmatprep.subr.mxu0 0.0
    %736 = vmatpush2.msra.mxu0 0.0
    %737 = vmatprep.subr.mxu0 0.0
    %738 = vmatpush2.msra.mxu0 0.0
    %739 = vmatprep.subr.mxu0 0.0
    %740 = vmatpush2.msra.mxu0 0.0
    %741 = vmatprep.subr.mxu0 0.0
    %742 = vmatpush2.msra.mxu0 0.0
    %743 = vmatprep.subr.mxu0 0.0
    %744 = vmatpush2.msra.mxu0 0.0
    %745 = vmatprep.mubr.f32.mxu0 0.0
    %746 = vmatmul.mubr.f32.gmra.mxu0 %v679
    %v747 = vpop.f32.mrf.mxu0
    %v748 = vadd.f32 0.0, %v747
    %v749 = vpop.f32.mrf.mxu0
    %v750 = vadd.f32 0.0, %v749
    %751 = vdwg.mxu0
    %752 = vmatprep.subr.mxu0 0.0
    %753 = vmatpush1.msra.mxu0 0.0
    %754 = vmatprep.subr.mxu0 0.0
    %755 = vmatpush1.msra.mxu0 0.0
    %756 = vmatprep.subr.mxu0 0.0
    %757 = vmatpush1.msra.mxu0 0.0
    %758 = vmatprep.subr.mxu0 0.0
    %759 = vmatpush1.msra.mxu0 0.0
    %760 = vmatprep.subr.mxu0 0.0
    %761 = vmatpush1.msra.mxu0 %v204
    %762 = vmatprep.subr.mxu0 0.0
    %763 = vmatpush1.msra.mxu0 %v201
    %764 = vmatprep.subr.mxu0 0.0
    %765 = vmatpush1.msra.mxu0 %v198
    %766 = vmatprep.subr.mxu0 0.0
    %767 = vmatpush1.msra.mxu0 %v195
    %768 = vmatprep.subr.mxu0 0.0
    %769 = vmatpush1.msra.mxu0 %v192
    %770 = vmatprep.subr.mxu0 0.0
    %771 = vmatpush1.msra.mxu0 %v189
    %772 = vmatprep.subr.mxu0 0.0
    %773 = vmatpush1.msra.mxu0 %v186
    %774 = vmatprep.subr.mxu0 0.0
    %775 = vmatpush1.msra.mxu0 %v183
    %776 = vmatprep.subr.mxu0 0.0
    %777 = vmatpush1.msra.mxu0 %v180
    %778 = vmatprep.subr.mxu0 0.0
    %779 = vmatpush1.msra.mxu0 %v177
    %780 = vmatprep.subr.mxu0 0.0
    %781 = vmatpush1.msra.mxu0 %v174
    %782 = vmatprep.subr.mxu0 0.0
    %783 = vmatpush1.msra.mxu0 %v171
    %784 = vmatprep.subr.mxu0 0.0
    %785 = vmatpush2.msra.mxu0 0.0
    %786 = vmatprep.subr.mxu0 0.0
    %787 = vmatpush2.msra.mxu0 0.0
    %788 = vmatprep.subr.mxu0 0.0
    %789 = vmatpush2.msra.mxu0 0.0
    %790 = vmatprep.subr.mxu0 0.0
    %791 = vmatpush2.msra.mxu0 0.0
    %792 = vmatprep.subr.mxu0 0.0
    %793 = vmatpush2.msra.mxu0 0.0
    %794 = vmatprep.subr.mxu0 0.0
    %795 = vmatpush2.msra.mxu0 0.0
    %796 = vmatprep.subr.mxu0 0.0
    %797 = vmatpush2.msra.mxu0 0.0
    %798 = vmatprep.subr.mxu0 0.0
    %799 = vmatpush2.msra.mxu0 0.0
    %800 = vmatprep.subr.mxu0 0.0
    %801 = vmatpush2.msra.mxu0 0.0
    %802 = vmatprep.subr.mxu0 0.0
    %803 = vmatpush2.msra.mxu0 0.0
    %804 = vmatprep.subr.mxu0 0.0
    %805 = vmatpush2.msra.mxu0 0.0
    %806 = vmatprep.subr.mxu0 0.0
    %807 = vmatpush2.msra.mxu0 0.0
    %808 = vmatprep.subr.mxu0 0.0
    %809 = vmatpush2.msra.mxu0 0.0
    %810 = vmatprep.subr.mxu0 0.0
    %811 = vmatpush2.msra.mxu0 0.0
    %812 = vmatprep.subr.mxu0 0.0
    %813 = vmatpush2.msra.mxu0 0.0
    %814 = vmatprep.subr.mxu0 0.0
    %815 = vmatpush2.msra.mxu0 0.0
    %816 = vmatprep.mubr.f32.mxu0 0.0
    %817 = vmatmul.mubr.f32.gmra.mxu0 %v679
    %v818 = vpop.f32.mrf.mxu0
    %v819 = vadd.f32 0.0, %v818
    %v820 = vpop.f32.mrf.mxu0
    %821 = vdwg.mxu0
    %v822 = vadd.f32 %v819, %v593
    %v823 = vmul.f32 %v822, 0.5
    %v824 = vtanh.pop %v823
    %v825 = vadd.f32 %v824, 1.0
    %v826 = vmul.f32 %v825, 0.5
    %v827 = vtanh.pop %v822
    %v828 = vmul.f32 %v826, %v610
    %830 = vrot.lane.b32.xlu0 %v827, 64
    %v831 = vpop.permute.xlu0 %830
    %v833 = vmul.f32 %v826, %v831
    %835 = vrot.lane.b32.xlu0 %v833, 32
    %v836 = vpop.permute.xlu0 %835
    %v838 = vadd.f32 %v828, %v836
    %v839 = vtanh.pop %v838
    %841 = vrot.lane.b32.xlu0 %v839, 64
    %v842 = vpop.permute.xlu0 %841
    %v844 = vmul.f32 %v826, %v842
    %v845 = vadd.f32 %v750, %v388
    %v846 = vmul.f32 %v845, 0.5
    %v847 = vtanh.pop %v846
    %v848 = vadd.f32 %v847, 1.0
    %v849 = vmul.f32 %v848, 0.5
    %v850 = vtanh.pop %v845
    %v851 = vmul.f32 %v849, %v633
    %853 = vrot.lane.b32.xlu0 %v850, 64
    %v854 = vpop.permute.xlu0 %853
    %v856 = vmul.f32 %v849, %v854
    %858 = vrot.lane.b32.xlu0 %v856, 32
    %v859 = vpop.permute.xlu0 %858
    %v861 = vadd.f32 %v851, %v859
    %v862 = vtanh.pop %v861
    %864 = vrot.lane.b32.xlu0 %v862, 64
    %v865 = vpop.permute.xlu0 %864
    %v867 = vmul.f32 %v849, %v865
    %v868 = vld [vmem:[#allocation2 + $0x6] sm:$0x3]
    %v869 = vadd.f32 %v748, %v868
    %v870 = vmul.f32 %v869, 0.5
    %v871 = vtanh.pop %v870
    %v872 = vadd.f32 %v871, 1.0
    %v873 = vmul.f32 %v872, 0.5
    %v874 = vtanh.pop %v869
    %v875 = vmul.f32 %v873, %v657
    %877 = vrot.lane.b32.xlu0 %v874, 64
    %v878 = vpop.permute.xlu0 %877
    %v880 = vmul.f32 %v873, %v878
    %882 = vrot.lane.b32.xlu0 %v880, 32
    %v883 = vpop.permute.xlu0 %882
    %v885 = vadd.f32 %v875, %v883
    %v886 = vtanh.pop %v885
    %888 = vrot.lane.b32.xlu0 %v886, 64
    %v889 = vpop.permute.xlu0 %888
    %v891 = vmul.f32 %v873, %v889
    %893 = vrot.lane.b32.xlu0 %v891, 32
    %v894 = vpop.permute.xlu0 %893
    %897 = vrot.lane.b32.xlu0 %v867, 64
    %v898 = vpop.permute.xlu0 %897
    %901 = vrot.lane.b32.xlu0 %v844, 96
    %v902 = vpop.permute.xlu0 %901
    %v904 = vsel %vm307, %v894, %v898
    %v905 = vsel %vm309, %v904, %v902
    %v907 = vsel %vm205, %v905, 0
    %909 = vmatprep.subr.mxu0 0.0
    %910 = vmatpush1.msra.mxu0 0.0
    %911 = vmatprep.subr.mxu0 0.0
    %912 = vmatpush1.msra.mxu0 0.0
    %913 = vmatprep.subr.mxu0 0.0
    %914 = vmatpush1.msra.mxu0 0.0
    %915 = vmatprep.subr.mxu0 0.0
    %916 = vmatpush1.msra.mxu0 0.0
    %917 = vmatprep.subr.mxu0 %v203
    %918 = vmatpush1.msra.mxu0 %v202
    %919 = vmatprep.subr.mxu0 %v200
    %920 = vmatpush1.msra.mxu0 %v199
    %921 = vmatprep.subr.mxu0 %v197
    %922 = vmatpush1.msra.mxu0 %v196
    %923 = vmatprep.subr.mxu0 %v194
    %924 = vmatpush1.msra.mxu0 %v193
    %925 = vmatprep.subr.mxu0 %v191
    %926 = vmatpush1.msra.mxu0 %v190
    %927 = vmatprep.subr.mxu0 %v188
    %928 = vmatpush1.msra.mxu0 %v187
    %929 = vmatprep.subr.mxu0 %v185
    %930 = vmatpush1.msra.mxu0 %v184
    %931 = vmatprep.subr.mxu0 %v182
    %932 = vmatpush1.msra.mxu0 %v181
    %933 = vmatprep.subr.mxu0 %v179
    %934 = vmatpush1.msra.mxu0 %v178
    %935 = vmatprep.subr.mxu0 %v176
    %936 = vmatpush1.msra.mxu0 %v175
    %937 = vmatprep.subr.mxu0 %v173
    %938 = vmatpush1.msra.mxu0 %v172
    %939 = vmatprep.subr.mxu0 %v170
    %940 = vmatpush1.msra.mxu0 %v169
    %941 = vmatprep.subr.mxu0 0.0
    %942 = vmatpush2.msra.mxu0 0.0
    %943 = vmatprep.subr.mxu0 0.0
    %944 = vmatpush2.msra.mxu0 0.0
    %945 = vmatprep.subr.mxu0 0.0
    %946 = vmatpush2.msra.mxu0 0.0
    %947 = vmatprep.subr.mxu0 0.0
    %948 = vmatpush2.msra.mxu0 0.0
    %949 = vmatprep.subr.mxu0 0.0
    %950 = vmatpush2.msra.mxu0 0.0
    %951 = vmatprep.subr.mxu0 0.0
    %952 = vmatpush2.msra.mxu0 0.0
    %953 = vmatprep.subr.mxu0 0.0
    %954 = vmatpush2.msra.mxu0 0.0
    %955 = vmatprep.subr.mxu0 0.0
    %956 = vmatpush2.msra.mxu0 0.0
    %957 = vmatprep.subr.mxu0 0.0
    %958 = vmatpush2.msra.mxu0 0.0
    %959 = vmatprep.subr.mxu0 0.0
    %960 = vmatpush2.msra.mxu0 0.0
    %961 = vmatprep.subr.mxu0 0.0
    %962 = vmatpush2.msra.mxu0 0.0
    %963 = vmatprep.subr.mxu0 0.0
    %964 = vmatpush2.msra.mxu0 0.0
    %965 = vmatprep.subr.mxu0 0.0
    %966 = vmatpush2.msra.mxu0 0.0
    %967 = vmatprep.subr.mxu0 0.0
    %968 = vmatpush2.msra.mxu0 0.0
    %969 = vmatprep.subr.mxu0 0.0
    %970 = vmatpush2.msra.mxu0 0.0
    %971 = vmatprep.subr.mxu0 0.0
    %972 = vmatpush2.msra.mxu0 0.0
    %973 = vmatprep.mubr.f32.mxu0 0.0
    %974 = vmatmul.mubr.f32.gmra.mxu0 %v907
    %v975 = vpop.f32.mrf.mxu0
    %v976 = vadd.f32 0.0, %v975
    %v977 = vpop.f32.mrf.mxu0
    %v978 = vadd.f32 0.0, %v977
    %979 = vdwg.mxu0
    %980 = vmatprep.subr.mxu0 0.0
    %981 = vmatpush1.msra.mxu0 0.0
    %982 = vmatprep.subr.mxu0 0.0
    %983 = vmatpush1.msra.mxu0 0.0
    %984 = vmatprep.subr.mxu0 0.0
    %985 = vmatpush1.msra.mxu0 0.0
    %986 = vmatprep.subr.mxu0 0.0
    %987 = vmatpush1.msra.mxu0 0.0
    %988 = vmatprep.subr.mxu0 0.0
    %989 = vmatpush1.msra.mxu0 %v204
    %990 = vmatprep.subr.mxu0 0.0
    %991 = vmatpush1.msra.mxu0 %v201
    %992 = vmatprep.subr.mxu0 0.0
    %993 = vmatpush1.msra.mxu0 %v198
    %994 = vmatprep.subr.mxu0 0.0
    %995 = vmatpush1.msra.mxu0 %v195
    %996 = vmatprep.subr.mxu0 0.0
    %997 = vmatpush1.msra.mxu0 %v192
    %998 = vmatprep.subr.mxu0 0.0
    %999 = vmatpush1.msra.mxu0 %v189
    %1000 = vmatprep.subr.mxu0 0.0
    %1001 = vmatpush1.msra.mxu0 %v186
    %1002 = vmatprep.subr.mxu0 0.0
    %1003 = vmatpush1.msra.mxu0 %v183
    %1004 = vmatprep.subr.mxu0 0.0
    %1005 = vmatpush1.msra.mxu0 %v180
    %1006 = vmatprep.subr.mxu0 0.0
    %1007 = vmatpush1.msra.mxu0 %v177
    %1008 = vmatprep.subr.mxu0 0.0
    %1009 = vmatpush1.msra.mxu0 %v174
    %1010 = vmatprep.subr.mxu0 0.0
    %1011 = vmatpush1.msra.mxu0 %v171
    %1012 = vmatprep.subr.mxu0 0.0
    %1013 = vmatpush2.msra.mxu0 0.0
    %1014 = vmatprep.subr.mxu0 0.0
    %1015 = vmatpush2.msra.mxu0 0.0
    %1016 = vmatprep.subr.mxu0 0.0
    %1017 = vmatpush2.msra.mxu0 0.0
    %1018 = vmatprep.subr.mxu0 0.0
    %1019 = vmatpush2.msra.mxu0 0.0
    %1020 = vmatprep.subr.mxu0 0.0
    %1021 = vmatpush2.msra.mxu0 0.0
    %1022 = vmatprep.subr.mxu0 0.0
    %1023 = vmatpush2.msra.mxu0 0.0
    %1024 = vmatprep.subr.mxu0 0.0
    %1025 = vmatpush2.msra.mxu0 0.0
    %1026 = vmatprep.subr.mxu0 0.0
    %1027 = vmatpush2.msra.mxu0 0.0
    %1028 = vmatprep.subr.mxu0 0.0
    %1029 = vmatpush2.msra.mxu0 0.0
    %1030 = vmatprep.subr.mxu0 0.0
    %1031 = vmatpush2.msra.mxu0 0.0
    %1032 = vmatprep.subr.mxu0 0.0
    %1033 = vmatpush2.msra.mxu0 0.0
    %1034 = vmatprep.subr.mxu0 0.0
    %1035 = vmatpush2.msra.mxu0 0.0
    %1036 = vmatprep.subr.mxu0 0.0
    %1037 = vmatpush2.msra.mxu0 0.0
    %1038 = vmatprep.subr.mxu0 0.0
    %1039 = vmatpush2.msra.mxu0 0.0
    %1040 = vmatprep.subr.mxu0 0.0
    %1041 = vmatpush2.msra.mxu0 0.0
    %1042 = vmatprep.subr.mxu0 0.0
    %1043 = vmatpush2.msra.mxu0 0.0
    %1044 = vmatprep.mubr.f32.mxu0 0.0
    %1045 = vmatmul.mubr.f32.gmra.mxu0 %v907
    %v1046 = vpop.f32.mrf.mxu0
    %v1047 = vadd.f32 0.0, %v1046
    %v1048 = vpop.f32.mrf.mxu0
    %1049 = vdwg.mxu0
    %v1050 = vadd.f32 %v1047, %v593
    %v1051 = vmul.f32 %v1050, 0.5
    %v1052 = vtanh.pop %v1051
    %v1053 = vadd.f32 %v1052, 1.0
    %v1054 = vmul.f32 %v1053, 0.5
    %v1055 = vtanh.pop %v1050
    %v1056 = vmul.f32 %v1054, %v838
    %1058 = vrot.lane.b32.xlu0 %v1055, 64
    %v1059 = vpop.permute.xlu0 %1058
    %v1061 = vmul.f32 %v1054, %v1059
    %1063 = vrot.lane.b32.xlu0 %v1061, 32
    %v1064 = vpop.permute.xlu0 %1063
    %v1066 = vadd.f32 %v1056, %v1064
    %v1067 = vtanh.pop %v1066
    %1069 = vrot.lane.b32.xlu0 %v1067, 64
    %v1070 = vpop.permute.xlu0 %1069
    %v1072 = vmul.f32 %v1054, %v1070
    %v1073 = vadd.f32 %v978, %v388
    %v1074 = vmul.f32 %v1073, 0.5
    %v1075 = vtanh.pop %v1074
    %v1076 = vadd.f32 %v1075, 1.0
    %v1077 = vmul.f32 %v1076, 0.5
    %v1078 = vtanh.pop %v1073
    %v1079 = vmul.f32 %v1077, %v861
    %1081 = vrot.lane.b32.xlu0 %v1078, 64
    %v1082 = vpop.permute.xlu0 %1081
    %v1084 = vmul.f32 %v1077, %v1082
    %1086 = vrot.lane.b32.xlu0 %v1084, 32
    %v1087 = vpop.permute.xlu0 %1086
    %v1089 = vadd.f32 %v1079, %v1087
    %v1090 = vtanh.pop %v1089
    %1092 = vrot.lane.b32.xlu0 %v1090, 64
    %v1093 = vpop.permute.xlu0 %1092
    %v1095 = vmul.f32 %v1077, %v1093
    %v1096 = vld [vmem:[#allocation2 + $0x8] sm:$0x3]
    %v1097 = vadd.f32 %v976, %v1096
    %v1098 = vmul.f32 %v1097, 0.5
    %v1099 = vtanh.pop %v1098
    %v1100 = vadd.f32 %v1099, 1.0
    %v1101 = vmul.f32 %v1100, 0.5
    %v1102 = vtanh.pop %v1097
    %v1103 = vmul.f32 %v1101, %v885
    %1105 = vrot.lane.b32.xlu0 %v1102, 64
    %v1106 = vpop.permute.xlu0 %1105
    %v1108 = vmul.f32 %v1101, %v1106
    %1110 = vrot.lane.b32.xlu0 %v1108, 32
    %v1111 = vpop.permute.xlu0 %1110
    %v1113 = vadd.f32 %v1103, %v1111
    %v1114 = vtanh.pop %v1113
    %1116 = vrot.lane.b32.xlu0 %v1114, 64
    %v1117 = vpop.permute.xlu0 %1116
    %v1119 = vmul.f32 %v1101, %v1117
    %1121 = vrot.lane.b32.xlu0 %v1119, 32
    %v1122 = vpop.permute.xlu0 %1121
    %1125 = vrot.lane.b32.xlu0 %v1095, 64
    %v1126 = vpop.permute.xlu0 %1125
    %1129 = vrot.lane.b32.xlu0 %v1072, 96
    %v1130 = vpop.permute.xlu0 %1129
    %v1132 = vsel %vm307, %v1122, %v1126
    %v1133 = vsel %vm309, %v1132, %v1130
    %v1135 = vsel %vm205, %v1133, 0
    %1137 = vmatprep.subr.mxu0 0.0
    %1138 = vmatpush1.msra.mxu0 0.0
    %1139 = vmatprep.subr.mxu0 0.0
    %1140 = vmatpush1.msra.mxu0 0.0
    %1141 = vmatprep.subr.mxu0 0.0
    %1142 = vmatpush1.msra.mxu0 0.0
    %1143 = vmatprep.subr.mxu0 0.0
    %1144 = vmatpush1.msra.mxu0 0.0
    %1145 = vmatprep.subr.mxu0 %v203
    %1146 = vmatpush1.msra.mxu0 %v202
    %1147 = vmatprep.subr.mxu0 %v200
    %1148 = vmatpush1.msra.mxu0 %v199
    %1149 = vmatprep.subr.mxu0 %v197
    %1150 = vmatpush1.msra.mxu0 %v196
    %1151 = vmatprep.subr.mxu0 %v194
    %1152 = vmatpush1.msra.mxu0 %v193
    %1153 = vmatprep.subr.mxu0 %v191
    %1154 = vmatpush1.msra.mxu0 %v190
    %1155 = vmatprep.subr.mxu0 %v188
    %1156 = vmatpush1.msra.mxu0 %v187
    %1157 = vmatprep.subr.mxu0 %v185
    %1158 = vmatpush1.msra.mxu0 %v184
    %1159 = vmatprep.subr.mxu0 %v182
    %1160 = vmatpush1.msra.mxu0 %v181
    %1161 = vmatprep.subr.mxu0 %v179
    %1162 = vmatpush1.msra.mxu0 %v178
    %1163 = vmatprep.subr.mxu0 %v176
    %1164 = vmatpush1.msra.mxu0 %v175
    %1165 = vmatprep.subr.mxu0 %v173
    %1166 = vmatpush1.msra.mxu0 %v172
    %1167 = vmatprep.subr.mxu0 %v170
    %1168 = vmatpush1.msra.mxu0 %v169
    %1169 = vmatprep.subr.mxu0 0.0
    %1170 = vmatpush2.msra.mxu0 0.0
    %1171 = vmatprep.subr.mxu0 0.0
    %1172 = vmatpush2.msra.mxu0 0.0
    %1173 = vmatprep.subr.mxu0 0.0
    %1174 = vmatpush2.msra.mxu0 0.0
    %1175 = vmatprep.subr.mxu0 0.0
    %1176 = vmatpush2.msra.mxu0 0.0
    %1177 = vmatprep.subr.mxu0 0.0
    %1178 = vmatpush2.msra.mxu0 0.0
    %1179 = vmatprep.subr.mxu0 0.0
    %1180 = vmatpush2.msra.mxu0 0.0
    %1181 = vmatprep.subr.mxu0 0.0
    %1182 = vmatpush2.msra.mxu0 0.0
    %1183 = vmatprep.subr.mxu0 0.0
    %1184 = vmatpush2.msra.mxu0 0.0
    %1185 = vmatprep.subr.mxu0 0.0
    %1186 = vmatpush2.msra.mxu0 0.0
    %1187 = vmatprep.subr.mxu0 0.0
    %1188 = vmatpush2.msra.mxu0 0.0
    %1189 = vmatprep.subr.mxu0 0.0
    %1190 = vmatpush2.msra.mxu0 0.0
    %1191 = vmatprep.subr.mxu0 0.0
    %1192 = vmatpush2.msra.mxu0 0.0
    %1193 = vmatprep.subr.mxu0 0.0
    %1194 = vmatpush2.msra.mxu0 0.0
    %1195 = vmatprep.subr.mxu0 0.0
    %1196 = vmatpush2.msra.mxu0 0.0
    %1197 = vmatprep.subr.mxu0 0.0
    %1198 = vmatpush2.msra.mxu0 0.0
    %1199 = vmatprep.subr.mxu0 0.0
    %1200 = vmatpush2.msra.mxu0 0.0
    %1201 = vmatprep.mubr.f32.mxu0 0.0
    %1202 = vmatmul.mubr.f32.gmra.mxu0 %v1135
    %v1203 = vpop.f32.mrf.mxu0
    %v1204 = vadd.f32 0.0, %v1203
    %v1205 = vpop.f32.mrf.mxu0
    %v1206 = vadd.f32 0.0, %v1205
    %1207 = vdwg.mxu0
    %1208 = vmatprep.subr.mxu0 0.0
    %1209 = vmatpush1.msra.mxu0 0.0
    %1210 = vmatprep.subr.mxu0 0.0
    %1211 = vmatpush1.msra.mxu0 0.0
    %1212 = vmatprep.subr.mxu0 0.0
    %1213 = vmatpush1.msra.mxu0 0.0
    %1214 = vmatprep.subr.mxu0 0.0
    %1215 = vmatpush1.msra.mxu0 0.0
    %1216 = vmatprep.subr.mxu0 0.0
    %1217 = vmatpush1.msra.mxu0 %v204
    %1218 = vmatprep.subr.mxu0 0.0
    %1219 = vmatpush1.msra.mxu0 %v201
    %1220 = vmatprep.subr.mxu0 0.0
    %1221 = vmatpush1.msra.mxu0 %v198
    %1222 = vmatprep.subr.mxu0 0.0
    %1223 = vmatpush1.msra.mxu0 %v195
    %1224 = vmatprep.subr.mxu0 0.0
    %1225 = vmatpush1.msra.mxu0 %v192
    %1226 = vmatprep.subr.mxu0 0.0
    %1227 = vmatpush1.msra.mxu0 %v189
    %1228 = vmatprep.subr.mxu0 0.0
    %1229 = vmatpush1.msra.mxu0 %v186
    %1230 = vmatprep.subr.mxu0 0.0
    %1231 = vmatpush1.msra.mxu0 %v183
    %1232 = vmatprep.subr.mxu0 0.0
    %1233 = vmatpush1.msra.mxu0 %v180
    %1234 = vmatprep.subr.mxu0 0.0
    %1235 = vmatpush1.msra.mxu0 %v177
    %1236 = vmatprep.subr.mxu0 0.0
    %1237 = vmatpush1.msra.mxu0 %v174
    %1238 = vmatprep.subr.mxu0 0.0
    %1239 = vmatpush1.msra.mxu0 %v171
    %1240 = vmatprep.subr.mxu0 0.0
    %1241 = vmatpush2.msra.mxu0 0.0
    %1242 = vmatprep.subr.mxu0 0.0
    %1243 = vmatpush2.msra.mxu0 0.0
    %1244 = vmatprep.subr.mxu0 0.0
    %1245 = vmatpush2.msra.mxu0 0.0
    %1246 = vmatprep.subr.mxu0 0.0
    %1247 = vmatpush2.msra.mxu0 0.0
    %1248 = vmatprep.subr.mxu0 0.0
    %1249 = vmatpush2.msra.mxu0 0.0
    %1250 = vmatprep.subr.mxu0 0.0
    %1251 = vmatpush2.msra.mxu0 0.0
    %1252 = vmatprep.subr.mxu0 0.0
    %1253 = vmatpush2.msra.mxu0 0.0
    %1254 = vmatprep.subr.mxu0 0.0
    %1255 = vmatpush2.msra.mxu0 0.0
    %1256 = vmatprep.subr.mxu0 0.0
    %1257 = vmatpush2.msra.mxu0 0.0
    %1258 = vmatprep.subr.mxu0 0.0
    %1259 = vmatpush2.msra.mxu0 0.0
    %1260 = vmatprep.subr.mxu0 0.0
    %1261 = vmatpush2.msra.mxu0 0.0
    %1262 = vmatprep.subr.mxu0 0.0
    %1263 = vmatpush2.msra.mxu0 0.0
    %1264 = vmatprep.subr.mxu0 0.0
    %1265 = vmatpush2.msra.mxu0 0.0
    %1266 = vmatprep.subr.mxu0 0.0
    %1267 = vmatpush2.msra.mxu0 0.0
    %1268 = vmatprep.subr.mxu0 0.0
    %1269 = vmatpush2.msra.mxu0 0.0
    %1270 = vmatprep.subr.mxu0 0.0
    %1271 = vmatpush2.msra.mxu0 0.0
    %1272 = vmatprep.mubr.f32.mxu0 0.0
    %1273 = vmatmul.mubr.f32.gmra.mxu0 %v1135
    %v1274 = vpop.f32.mrf.mxu0
    %v1275 = vadd.f32 0.0, %v1274
    %v1276 = vpop.f32.mrf.mxu0
    %1277 = vdwg.mxu0
    %v1278 = vadd.f32 %v1275, %v593
    %v1279 = vmul.f32 %v1278, 0.5
    %v1280 = vtanh.pop %v1279
    %v1281 = vadd.f32 %v1280, 1.0
    %v1282 = vmul.f32 %v1281, 0.5
    %v1283 = vtanh.pop %v1278
    %v1284 = vmul.f32 %v1282, %v1066
    %1286 = vrot.lane.b32.xlu0 %v1283, 64
    %v1287 = vpop.permute.xlu0 %1286
    %v1289 = vmul.f32 %v1282, %v1287
    %1291 = vrot.lane.b32.xlu0 %v1289, 32
    %v1292 = vpop.permute.xlu0 %1291
    %v1294 = vadd.f32 %v1284, %v1292
    %v1295 = vtanh.pop %v1294
    %1297 = vrot.lane.b32.xlu0 %v1295, 64
    %v1298 = vpop.permute.xlu0 %1297
    %v1300 = vmul.f32 %v1282, %v1298
    %v1301 = vadd.f32 %v1206, %v388
    %v1302 = vmul.f32 %v1301, 0.5
    %v1303 = vtanh.pop %v1302
    %v1304 = vadd.f32 %v1303, 1.0
    %v1305 = vmul.f32 %v1304, 0.5
    %v1306 = vtanh.pop %v1301
    %v1307 = vmul.f32 %v1305, %v1089
    %1309 = vrot.lane.b32.xlu0 %v1306, 64
    %v1310 = vpop.permute.xlu0 %1309
    %v1312 = vmul.f32 %v1305, %v1310
    %1314 = vrot.lane.b32.xlu0 %v1312, 32
    %v1315 = vpop.permute.xlu0 %1314
    %v1317 = vadd.f32 %v1307, %v1315
    %v1318 = vtanh.pop %v1317
    %1320 = vrot.lane.b32.xlu0 %v1318, 64
    %v1321 = vpop.permute.xlu0 %1320
    %v1323 = vmul.f32 %v1305, %v1321
    %v1324 = vld [vmem:[#allocation2 + $0xa] sm:$0x3]
    %v1325 = vadd.f32 %v1204, %v1324
    %v1326 = vmul.f32 %v1325, 0.5
    %v1327 = vtanh.pop %v1326
    %v1328 = vadd.f32 %v1327, 1.0
    %v1329 = vmul.f32 %v1328, 0.5
    %v1330 = vtanh.pop %v1325
    %v1331 = vmul.f32 %v1329, %v1113
    %1333 = vrot.lane.b32.xlu0 %v1330, 64
    %v1334 = vpop.permute.xlu0 %1333
    %v1336 = vmul.f32 %v1329, %v1334
    %1338 = vrot.lane.b32.xlu0 %v1336, 32
    %v1339 = vpop.permute.xlu0 %1338
    %v1341 = vadd.f32 %v1331, %v1339
    %v1342 = vtanh.pop %v1341
    %1344 = vrot.lane.b32.xlu0 %v1342, 64
    %v1345 = vpop.permute.xlu0 %1344
    %v1347 = vmul.f32 %v1329, %v1345
    %1349 = vrot.lane.b32.xlu0 %v1347, 32
    %v1350 = vpop.permute.xlu0 %1349
    %1353 = vrot.lane.b32.xlu0 %v1323, 64
    %v1354 = vpop.permute.xlu0 %1353
    %1357 = vrot.lane.b32.xlu0 %v1300, 96
    %v1358 = vpop.permute.xlu0 %1357
    %v1360 = vsel %vm307, %v1350, %v1354
    %v1361 = vsel %vm309, %v1360, %v1358
    %v1363 = vsel %vm205, %v1361, 0
    %1365 = vmatprep.subr.mxu0 0.0
    %1366 = vmatpush1.msra.mxu0 0.0
    %1367 = vmatprep.subr.mxu0 0.0
    %1368 = vmatpush1.msra.mxu0 0.0
    %1369 = vmatprep.subr.mxu0 0.0
    %1370 = vmatpush1.msra.mxu0 0.0
    %1371 = vmatprep.subr.mxu0 0.0
    %1372 = vmatpush1.msra.mxu0 0.0
    %1373 = vmatprep.subr.mxu0 %v203
    %1374 = vmatpush1.msra.mxu0 %v202
    %1375 = vmatprep.subr.mxu0 %v200
    %1376 = vmatpush1.msra.mxu0 %v199
    %1377 = vmatprep.subr.mxu0 %v197
    %1378 = vmatpush1.msra.mxu0 %v196
    %1379 = vmatprep.subr.mxu0 %v194
    %1380 = vmatpush1.msra.mxu0 %v193
    %1381 = vmatprep.subr.mxu0 %v191
    %1382 = vmatpush1.msra.mxu0 %v190
    %1383 = vmatprep.subr.mxu0 %v188
    %1384 = vmatpush1.msra.mxu0 %v187
    %1385 = vmatprep.subr.mxu0 %v185
    %1386 = vmatpush1.msra.mxu0 %v184
    %1387 = vmatprep.subr.mxu0 %v182
    %1388 = vmatpush1.msra.mxu0 %v181
    %1389 = vmatprep.subr.mxu0 %v179
    %1390 = vmatpush1.msra.mxu0 %v178
    %1391 = vmatprep.subr.mxu0 %v176
    %1392 = vmatpush1.msra.mxu0 %v175
    %1393 = vmatprep.subr.mxu0 %v173
    %1394 = vmatpush1.msra.mxu0 %v172
    %1395 = vmatprep.subr.mxu0 %v170
    %1396 = vmatpush1.msra.mxu0 %v169
    %1397 = vmatprep.subr.mxu0 0.0
    %1398 = vmatpush2.msra.mxu0 0.0
    %1399 = vmatprep.subr.mxu0 0.0
    %1400 = vmatpush2.msra.mxu0 0.0
    %1401 = vmatprep.subr.mxu0 0.0
    %1402 = vmatpush2.msra.mxu0 0.0
    %1403 = vmatprep.subr.mxu0 0.0
    %1404 = vmatpush2.msra.mxu0 0.0
    %1405 = vmatprep.subr.mxu0 0.0
    %1406 = vmatpush2.msra.mxu0 0.0
    %1407 = vmatprep.subr.mxu0 0.0
    %1408 = vmatpush2.msra.mxu0 0.0
    %1409 = vmatprep.subr.mxu0 0.0
    %1410 = vmatpush2.msra.mxu0 0.0
    %1411 = vmatprep.subr.mxu0 0.0
    %1412 = vmatpush2.msra.mxu0 0.0
    %1413 = vmatprep.subr.mxu0 0.0
    %1414 = vmatpush2.msra.mxu0 0.0
    %1415 = vmatprep.subr.mxu0 0.0
    %1416 = vmatpush2.msra.mxu0 0.0
    %1417 = vmatprep.subr.mxu0 0.0
    %1418 = vmatpush2.msra.mxu0 0.0
    %1419 = vmatprep.subr.mxu0 0.0
    %1420 = vmatpush2.msra.mxu0 0.0
    %1421 = vmatprep.subr.mxu0 0.0
    %1422 = vmatpush2.msra.mxu0 0.0
    %1423 = vmatprep.subr.mxu0 0.0
    %1424 = vmatpush2.msra.mxu0 0.0
    %1425 = vmatprep.subr.mxu0 0.0
    %1426 = vmatpush2.msra.mxu0 0.0
    %1427 = vmatprep.subr.mxu0 0.0
    %1428 = vmatpush2.msra.mxu0 0.0
    %1429 = vmatprep.mubr.f32.mxu0 0.0
    %1430 = vmatmul.mubr.f32.gmra.mxu0 %v1363
    %v1431 = vpop.f32.mrf.mxu0
    %v1432 = vadd.f32 0.0, %v1431
    %v1433 = vpop.f32.mrf.mxu0
    %v1434 = vadd.f32 0.0, %v1433
    %1435 = vdwg.mxu0
    %1436 = vmatprep.subr.mxu0 0.0
    %1437 = vmatpush1.msra.mxu0 0.0
    %1438 = vmatprep.subr.mxu0 0.0
    %1439 = vmatpush1.msra.mxu0 0.0
    %1440 = vmatprep.subr.mxu0 0.0
    %1441 = vmatpush1.msra.mxu0 0.0
    %1442 = vmatprep.subr.mxu0 0.0
    %1443 = vmatpush1.msra.mxu0 0.0
    %1444 = vmatprep.subr.mxu0 0.0
    %1445 = vmatpush1.msra.mxu0 %v204
    %1446 = vmatprep.subr.mxu0 0.0
    %1447 = vmatpush1.msra.mxu0 %v201
    %1448 = vmatprep.subr.mxu0 0.0
    %1449 = vmatpush1.msra.mxu0 %v198
    %1450 = vmatprep.subr.mxu0 0.0
    %1451 = vmatpush1.msra.mxu0 %v195
    %1452 = vmatprep.subr.mxu0 0.0
    %1453 = vmatpush1.msra.mxu0 %v192
    %1454 = vmatprep.subr.mxu0 0.0
    %1455 = vmatpush1.msra.mxu0 %v189
    %1456 = vmatprep.subr.mxu0 0.0
    %1457 = vmatpush1.msra.mxu0 %v186
    %1458 = vmatprep.subr.mxu0 0.0
    %1459 = vmatpush1.msra.mxu0 %v183
    %1460 = vmatprep.subr.mxu0 0.0
    %1461 = vmatpush1.msra.mxu0 %v180
    %1462 = vmatprep.subr.mxu0 0.0
    %1463 = vmatpush1.msra.mxu0 %v177
    %1464 = vmatprep.subr.mxu0 0.0
    %1465 = vmatpush1.msra.mxu0 %v174
    %1466 = vmatprep.subr.mxu0 0.0
    %1467 = vmatpush1.msra.mxu0 %v171
    %1468 = vmatprep.subr.mxu0 0.0
    %1469 = vmatpush2.msra.mxu0 0.0
    %1470 = vmatprep.subr.mxu0 0.0
    %1471 = vmatpush2.msra.mxu0 0.0
    %1472 = vmatprep.subr.mxu0 0.0
    %1473 = vmatpush2.msra.mxu0 0.0
    %1474 = vmatprep.subr.mxu0 0.0
    %1475 = vmatpush2.msra.mxu0 0.0
    %1476 = vmatprep.subr.mxu0 0.0
    %1477 = vmatpush2.msra.mxu0 0.0
    %1478 = vmatprep.subr.mxu0 0.0
    %1479 = vmatpush2.msra.mxu0 0.0
    %1480 = vmatprep.subr.mxu0 0.0
    %1481 = vmatpush2.msra.mxu0 0.0
    %1482 = vmatprep.subr.mxu0 0.0
    %1483 = vmatpush2.msra.mxu0 0.0
    %1484 = vmatprep.subr.mxu0 0.0
    %1485 = vmatpush2.msra.mxu0 0.0
    %1486 = vmatprep.subr.mxu0 0.0
    %1487 = vmatpush2.msra.mxu0 0.0
    %1488 = vmatprep.subr.mxu0 0.0
    %1489 = vmatpush2.msra.mxu0 0.0
    %1490 = vmatprep.subr.mxu0 0.0
    %1491 = vmatpush2.msra.mxu0 0.0
    %1492 = vmatprep.subr.mxu0 0.0
    %1493 = vmatpush2.msra.mxu0 0.0
    %1494 = vmatprep.subr.mxu0 0.0
    %1495 = vmatpush2.msra.mxu0 0.0
    %1496 = vmatprep.subr.mxu0 0.0
    %1497 = vmatpush2.msra.mxu0 0.0
    %1498 = vmatprep.subr.mxu0 0.0
    %1499 = vmatpush2.msra.mxu0 0.0
    %1500 = vmatprep.mubr.f32.mxu0 0.0
    %1501 = vmatmul.mubr.f32.gmra.mxu0 %v1363
    %v1502 = vpop.f32.mrf.mxu0
    %v1503 = vadd.f32 0.0, %v1502
    %v1504 = vpop.f32.mrf.mxu0
    %1505 = vdwg.mxu0
    %v1506 = vadd.f32 %v1503, %v593
    %v1507 = vmul.f32 %v1506, 0.5
    %v1508 = vtanh.pop %v1507
    %v1509 = vadd.f32 %v1508, 1.0
    %v1510 = vmul.f32 %v1509, 0.5
    %v1511 = vtanh.pop %v1506
    %v1512 = vmul.f32 %v1510, %v1294
    %1514 = vrot.lane.b32.xlu0 %v1511, 64
    %v1515 = vpop.permute.xlu0 %1514
    %v1517 = vmul.f32 %v1510, %v1515
    %1519 = vrot.lane.b32.xlu0 %v1517, 32
    %v1520 = vpop.permute.xlu0 %1519
    %v1522 = vadd.f32 %v1512, %v1520
    %v1523 = vtanh.pop %v1522
    %1525 = vrot.lane.b32.xlu0 %v1523, 64
    %v1526 = vpop.permute.xlu0 %1525
    %v1528 = vmul.f32 %v1510, %v1526
    %1530 = vrot.lane.b32.xlu0 %v1528, 32
    %v1531 = vpop.permute.xlu0 %1530
    %vm1533 = vcmask 254976
    %1534 = vst.msk [vmem:[#allocation3] sm:$0x3] %vm1533, %v1531
    %v1535 = vadd.f32 %v1434, %v388
    %v1536 = vmul.f32 %v1535, 0.5
    %v1537 = vtanh.pop %v1536
    %v1538 = vadd.f32 %v1537, 1.0
    %v1539 = vmul.f32 %v1538, 0.5
    %v1540 = vtanh.pop %v1535
    %v1541 = vmul.f32 %v1539, %v1317
    %1543 = vrot.lane.b32.xlu0 %v1540, 64
    %v1544 = vpop.permute.xlu0 %1543
    %v1546 = vmul.f32 %v1539, %v1544
    %1548 = vrot.lane.b32.xlu0 %v1546, 32
    %v1549 = vpop.permute.xlu0 %1548
    %v1551 = vadd.f32 %v1541, %v1549
    %v1552 = vtanh.pop %v1551
    %1554 = vrot.lane.b32.xlu0 %v1552, 64
    %v1555 = vpop.permute.xlu0 %1554
    %v1557 = vmul.f32 %v1539, %v1555
    %v1558 = vld [vmem:[#allocation2 + $0xc] sm:$0x3]
    %v1559 = vadd.f32 %v1432, %v1558
    %v1560 = vmul.f32 %v1559, 0.5
    %v1561 = vtanh.pop %v1560
    %v1562 = vadd.f32 %v1561, 1.0
    %v1563 = vmul.f32 %v1562, 0.5
    %v1564 = vtanh.pop %v1559
    %v1565 = vmul.f32 %v1563, %v1341
    %1567 = vrot.lane.b32.xlu0 %v1564, 64
    %v1568 = vpop.permute.xlu0 %1567
    %v1570 = vmul.f32 %v1563, %v1568
    %1572 = vrot.lane.b32.xlu0 %v1570, 32
    %v1573 = vpop.permute.xlu0 %1572
    %v1575 = vadd.f32 %v1565, %v1573
    %v1576 = vtanh.pop %v1575
    %1578 = vrot.lane.b32.xlu0 %v1576, 64
    %v1579 = vpop.permute.xlu0 %1578
    %v1581 = vmul.f32 %v1563, %v1579
    %1583 = vrot.lane.b32.xlu0 %v1581, 32
    %v1584 = vpop.permute.xlu0 %1583
    %1587 = vrot.lane.b32.xlu0 %v1557, 64
    %v1588 = vpop.permute.xlu0 %1587
    %1590 = vrot.lane.b32.xlu0 %v1528, 96
    %v1591 = vpop.permute.xlu0 %1590
    %v1593 = vsel %vm307, %v1584, %v1588
    %v1594 = vsel %vm309, %v1593, %v1591
    %v1596 = vsel %vm205, %v1594, 0
    %1598 = vmatprep.subr.mxu0 0.0
    %1599 = vmatpush1.msra.mxu0 0.0
    %1600 = vmatprep.subr.mxu0 0.0
    %1601 = vmatpush1.msra.mxu0 0.0
    %1602 = vmatprep.subr.mxu0 0.0
    %1603 = vmatpush1.msra.mxu0 0.0
    %1604 = vmatprep.subr.mxu0 0.0
    %1605 = vmatpush1.msra.mxu0 0.0
    %1606 = vmatprep.subr.mxu0 %v203
    %1607 = vmatpush1.msra.mxu0 %v202
    %1608 = vmatprep.subr.mxu0 %v200
    %1609 = vmatpush1.msra.mxu0 %v199
    %1610 = vmatprep.subr.mxu0 %v197
    %1611 = vmatpush1.msra.mxu0 %v196
    %1612 = vmatprep.subr.mxu0 %v194
    %1613 = vmatpush1.msra.mxu0 %v193
    %1614 = vmatprep.subr.mxu0 %v191
    %1615 = vmatpush1.msra.mxu0 %v190
    %1616 = vmatprep.subr.mxu0 %v188
    %1617 = vmatpush1.msra.mxu0 %v187
    %1618 = vmatprep.subr.mxu0 %v185
    %1619 = vmatpush1.msra.mxu0 %v184
    %1620 = vmatprep.subr.mxu0 %v182
    %1621 = vmatpush1.msra.mxu0 %v181
    %1622 = vmatprep.subr.mxu0 %v179
    %1623 = vmatpush1.msra.mxu0 %v178
    %1624 = vmatprep.subr.mxu0 %v176
    %1625 = vmatpush1.msra.mxu0 %v175
    %1626 = vmatprep.subr.mxu0 %v173
    %1627 = vmatpush1.msra.mxu0 %v172
    %1628 = vmatprep.subr.mxu0 %v170
    %1629 = vmatpush1.msra.mxu0 %v169
    %1630 = vmatprep.subr.mxu0 0.0
    %1631 = vmatpush2.msra.mxu0 0.0
    %1632 = vmatprep.subr.mxu0 0.0
    %1633 = vmatpush2.msra.mxu0 0.0
    %1634 = vmatprep.subr.mxu0 0.0
    %1635 = vmatpush2.msra.mxu0 0.0
    %1636 = vmatprep.subr.mxu0 0.0
    %1637 = vmatpush2.msra.mxu0 0.0
    %1638 = vmatprep.subr.mxu0 0.0
    %1639 = vmatpush2.msra.mxu0 0.0
    %1640 = vmatprep.subr.mxu0 0.0
    %1641 = vmatpush2.msra.mxu0 0.0
    %1642 = vmatprep.subr.mxu0 0.0
    %1643 = vmatpush2.msra.mxu0 0.0
    %1644 = vmatprep.subr.mxu0 0.0
    %1645 = vmatpush2.msra.mxu0 0.0
    %1646 = vmatprep.subr.mxu0 0.0
    %1647 = vmatpush2.msra.mxu0 0.0
    %1648 = vmatprep.subr.mxu0 0.0
    %1649 = vmatpush2.msra.mxu0 0.0
    %1650 = vmatprep.subr.mxu0 0.0
    %1651 = vmatpush2.msra.mxu0 0.0
    %1652 = vmatprep.subr.mxu0 0.0
    %1653 = vmatpush2.msra.mxu0 0.0
    %1654 = vmatprep.subr.mxu0 0.0
    %1655 = vmatpush2.msra.mxu0 0.0
    %1656 = vmatprep.subr.mxu0 0.0
    %1657 = vmatpush2.msra.mxu0 0.0
    %1658 = vmatprep.subr.mxu0 0.0
    %1659 = vmatpush2.msra.mxu0 0.0
    %1660 = vmatprep.subr.mxu0 0.0
    %1661 = vmatpush2.msra.mxu0 0.0
    %1662 = vmatprep.mubr.f32.mxu0 0.0
    %1663 = vmatmul.mubr.f32.gmra.mxu0 %v1596
    %v1664 = vpop.f32.mrf.mxu0
    %v1665 = vadd.f32 0.0, %v1664
    %v1666 = vpop.f32.mrf.mxu0
    %v1667 = vadd.f32 0.0, %v1666
    %1668 = vdwg.mxu0
    %1669 = vmatprep.subr.mxu0 0.0
    %1670 = vmatpush1.msra.mxu0 0.0
    %1671 = vmatprep.subr.mxu0 0.0
    %1672 = vmatpush1.msra.mxu0 0.0
    %1673 = vmatprep.subr.mxu0 0.0
    %1674 = vmatpush1.msra.mxu0 0.0
    %1675 = vmatprep.subr.mxu0 0.0
    %1676 = vmatpush1.msra.mxu0 0.0
    %1677 = vmatprep.subr.mxu0 0.0
    %1678 = vmatpush1.msra.mxu0 %v204
    %1679 = vmatprep.subr.mxu0 0.0
    %1680 = vmatpush1.msra.mxu0 %v201
    %1681 = vmatprep.subr.mxu0 0.0
    %1682 = vmatpush1.msra.mxu0 %v198
    %1683 = vmatprep.subr.mxu0 0.0
    %1684 = vmatpush1.msra.mxu0 %v195
    %1685 = vmatprep.subr.mxu0 0.0
    %1686 = vmatpush1.msra.mxu0 %v192
    %1687 = vmatprep.subr.mxu0 0.0
    %1688 = vmatpush1.msra.mxu0 %v189
    %1689 = vmatprep.subr.mxu0 0.0
    %1690 = vmatpush1.msra.mxu0 %v186
    %1691 = vmatprep.subr.mxu0 0.0
    %1692 = vmatpush1.msra.mxu0 %v183
    %1693 = vmatprep.subr.mxu0 0.0
    %1694 = vmatpush1.msra.mxu0 %v180
    %1695 = vmatprep.subr.mxu0 0.0
    %1696 = vmatpush1.msra.mxu0 %v177
    %1697 = vmatprep.subr.mxu0 0.0
    %1698 = vmatpush1.msra.mxu0 %v174
    %1699 = vmatprep.subr.mxu0 0.0
    %1700 = vmatpush1.msra.mxu0 %v171
    %1701 = vmatprep.subr.mxu0 0.0
    %1702 = vmatpush2.msra.mxu0 0.0
    %1703 = vmatprep.subr.mxu0 0.0
    %1704 = vmatpush2.msra.mxu0 0.0
    %1705 = vmatprep.subr.mxu0 0.0
    %1706 = vmatpush2.msra.mxu0 0.0
    %1707 = vmatprep.subr.mxu0 0.0
    %1708 = vmatpush2.msra.mxu0 0.0
    %1709 = vmatprep.subr.mxu0 0.0
    %1710 = vmatpush2.msra.mxu0 0.0
    %1711 = vmatprep.subr.mxu0 0.0
    %1712 = vmatpush2.msra.mxu0 0.0
    %1713 = vmatprep.subr.mxu0 0.0
    %1714 = vmatpush2.msra.mxu0 0.0
    %1715 = vmatprep.subr.mxu0 0.0
    %1716 = vmatpush2.msra.mxu0 0.0
    %1717 = vmatprep.subr.mxu0 0.0
    %1718 = vmatpush2.msra.mxu0 0.0
    %1719 = vmatprep.subr.mxu0 0.0
    %1720 = vmatpush2.msra.mxu0 0.0
    %1721 = vmatprep.subr.mxu0 0.0
    %1722 = vmatpush2.msra.mxu0 0.0
    %1723 = vmatprep.subr.mxu0 0.0
    %1724 = vmatpush2.msra.mxu0 0.0
    %1725 = vmatprep.subr.mxu0 0.0
    %1726 = vmatpush2.msra.mxu0 0.0
    %1727 = vmatprep.subr.mxu0 0.0
    %1728 = vmatpush2.msra.mxu0 0.0
    %1729 = vmatprep.subr.mxu0 0.0
    %1730 = vmatpush2.msra.mxu0 0.0
    %1731 = vmatprep.subr.mxu0 0.0
    %1732 = vmatpush2.msra.mxu0 0.0
    %1733 = vmatprep.mubr.f32.mxu0 0.0
    %1734 = vmatmul.mubr.f32.gmra.mxu0 %v1596
    %v1735 = vpop.f32.mrf.mxu0
    %v1736 = vadd.f32 0.0, %v1735
    %v1737 = vpop.f32.mrf.mxu0
    %1738 = vdwg.mxu0
    %v1739 = vadd.f32 %v1736, %v593
    %v1740 = vmul.f32 %v1739, 0.5
    %v1741 = vtanh.pop %v1740
    %v1742 = vadd.f32 %v1741, 1.0
    %v1743 = vmul.f32 %v1742, 0.5
    %v1744 = vtanh.pop %v1739
    %v1745 = vmul.f32 %v1743, %v1522
    %1747 = vrot.lane.b32.xlu0 %v1744, 64
    %v1748 = vpop.permute.xlu0 %1747
    %v1750 = vmul.f32 %v1743, %v1748
    %1752 = vrot.lane.b32.xlu0 %v1750, 32
    %v1753 = vpop.permute.xlu0 %1752
    %v1755 = vadd.f32 %v1745, %v1753
    %v1756 = vtanh.pop %v1755
    %1758 = vrot.lane.b32.xlu0 %v1756, 64
    %v1759 = vpop.permute.xlu0 %1758
    %v1761 = vmul.f32 %v1743, %v1759
    %1763 = vrot.lane.b32.xlu0 %v1761, 32
    %v1764 = vpop.permute.xlu0 %1763
    %1766 = vst.msk [vmem:[#allocation3 + $0x2] sm:$0x3] %vm1533, %v1764
    %v1767 = vadd.f32 %v1667, %v388
    %v1768 = vmul.f32 %v1767, 0.5
    %v1769 = vtanh.pop %v1768
    %v1770 = vadd.f32 %v1769, 1.0
    %v1771 = vmul.f32 %v1770, 0.5
    %v1772 = vtanh.pop %v1767
    %v1773 = vmul.f32 %v1771, %v1551
    %1775 = vrot.lane.b32.xlu0 %v1772, 64
    %v1776 = vpop.permute.xlu0 %1775
    %v1778 = vmul.f32 %v1771, %v1776
    %1780 = vrot.lane.b32.xlu0 %v1778, 32
    %v1781 = vpop.permute.xlu0 %1780
    %v1783 = vadd.f32 %v1773, %v1781
    %v1784 = vtanh.pop %v1783
    %1786 = vrot.lane.b32.xlu0 %v1784, 64
    %v1787 = vpop.permute.xlu0 %1786
    %v1789 = vmul.f32 %v1771, %v1787
    %v1790 = vld [vmem:[#allocation2 + $0xe] sm:$0x3]
    %v1791 = vadd.f32 %v1665, %v1790
    %v1792 = vmul.f32 %v1791, 0.5
    %v1793 = vtanh.pop %v1792
    %v1794 = vadd.f32 %v1793, 1.0
    %v1795 = vmul.f32 %v1794, 0.5
    %v1796 = vtanh.pop %v1791
    %v1797 = vmul.f32 %v1795, %v1575
    %1799 = vrot.lane.b32.xlu0 %v1796, 64
    %v1800 = vpop.permute.xlu0 %1799
    %v1802 = vmul.f32 %v1795, %v1800
    %1804 = vrot.lane.b32.xlu0 %v1802, 32
    %v1805 = vpop.permute.xlu0 %1804
    %v1807 = vadd.f32 %v1797, %v1805
    %v1808 = vtanh.pop %v1807
    %1810 = vrot.lane.b32.xlu0 %v1808, 64
    %v1811 = vpop.permute.xlu0 %1810
    %v1813 = vmul.f32 %v1795, %v1811
    %1815 = vrot.lane.b32.xlu0 %v1813, 32
    %v1816 = vpop.permute.xlu0 %1815
    %1819 = vrot.lane.b32.xlu0 %v1789, 64
    %v1820 = vpop.permute.xlu0 %1819
    %1822 = vrot.lane.b32.xlu0 %v1761, 96
    %v1823 = vpop.permute.xlu0 %1822
    %v1825 = vsel %vm307, %v1816, %v1820
    %v1826 = vsel %vm309, %v1825, %v1823
    %v1828 = vsel %vm205, %v1826, 0
    %1830 = vmatprep.subr.mxu0 0.0
    %1831 = vmatpush1.msra.mxu0 0.0
    %1832 = vmatprep.subr.mxu0 0.0
    %1833 = vmatpush1.msra.mxu0 0.0
    %1834 = vmatprep.subr.mxu0 0.0
    %1835 = vmatpush1.msra.mxu0 0.0
    %1836 = vmatprep.subr.mxu0 0.0
    %1837 = vmatpush1.msra.mxu0 0.0
    %1838 = vmatprep.subr.mxu0 %v203
    %1839 = vmatpush1.msra.mxu0 %v202
    %1840 = vmatprep.subr.mxu0 %v200
    %1841 = vmatpush1.msra.mxu0 %v199
    %1842 = vmatprep.subr.mxu0 %v197
    %1843 = vmatpush1.msra.mxu0 %v196
    %1844 = vmatprep.subr.mxu0 %v194
    %1845 = vmatpush1.msra.mxu0 %v193
    %1846 = vmatprep.subr.mxu0 %v191
    %1847 = vmatpush1.msra.mxu0 %v190
    %1848 = vmatprep.subr.mxu0 %v188
    %1849 = vmatpush1.msra.mxu0 %v187
    %1850 = vmatprep.subr.mxu0 %v185
    %1851 = vmatpush1.msra.mxu0 %v184
    %1852 = vmatprep.subr.mxu0 %v182
    %1853 = vmatpush1.msra.mxu0 %v181
    %1854 = vmatprep.subr.mxu0 %v179
    %1855 = vmatpush1.msra.mxu0 %v178
    %1856 = vmatprep.subr.mxu0 %v176
    %1857 = vmatpush1.msra.mxu0 %v175
    %1858 = vmatprep.subr.mxu0 %v173
    %1859 = vmatpush1.msra.mxu0 %v172
    %1860 = vmatprep.subr.mxu0 %v170
    %1861 = vmatpush1.msra.mxu0 %v169
    %1862 = vmatprep.subr.mxu0 0.0
    %1863 = vmatpush2.msra.mxu0 0.0
    %1864 = vmatprep.subr.mxu0 0.0
    %1865 = vmatpush2.msra.mxu0 0.0
    %1866 = vmatprep.subr.mxu0 0.0
    %1867 = vmatpush2.msra.mxu0 0.0
    %1868 = vmatprep.subr.mxu0 0.0
    %1869 = vmatpush2.msra.mxu0 0.0
    %1870 = vmatprep.subr.mxu0 0.0
    %1871 = vmatpush2.msra.mxu0 0.0
    %1872 = vmatprep.subr.mxu0 0.0
    %1873 = vmatpush2.msra.mxu0 0.0
    %1874 = vmatprep.subr.mxu0 0.0
    %1875 = vmatpush2.msra.mxu0 0.0
    %1876 = vmatprep.subr.mxu0 0.0
    %1877 = vmatpush2.msra.mxu0 0.0
    %1878 = vmatprep.subr.mxu0 0.0
    %1879 = vmatpush2.msra.mxu0 0.0
    %1880 = vmatprep.subr.mxu0 0.0
    %1881 = vmatpush2.msra.mxu0 0.0
    %1882 = vmatprep.subr.mxu0 0.0
    %1883 = vmatpush2.msra.mxu0 0.0
    %1884 = vmatprep.subr.mxu0 0.0
    %1885 = vmatpush2.msra.mxu0 0.0
    %1886 = vmatprep.subr.mxu0 0.0
    %1887 = vmatpush2.msra.mxu0 0.0
    %1888 = vmatprep.subr.mxu0 0.0
    %1889 = vmatpush2.msra.mxu0 0.0
    %1890 = vmatprep.subr.mxu0 0.0
    %1891 = vmatpush2.msra.mxu0 0.0
    %1892 = vmatprep.subr.mxu0 0.0
    %1893 = vmatpush2.msra.mxu0 0.0
    %1894 = vmatprep.mubr.f32.mxu0 0.0
    %1895 = vmatmul.mubr.f32.gmra.mxu0 %v1828
    %v1896 = vpop.f32.mrf.mxu0
    %v1897 = vpop.f32.mrf.mxu0
    %v1898 = vadd.f32 0.0, %v1897
    %1899 = vdwg.mxu0
    %1900 = vmatprep.subr.mxu0 0.0
    %1901 = vmatpush1.msra.mxu0 0.0
    %1902 = vmatprep.subr.mxu0 0.0
    %1903 = vmatpush1.msra.mxu0 0.0
    %1904 = vmatprep.subr.mxu0 0.0
    %1905 = vmatpush1.msra.mxu0 0.0
    %1906 = vmatprep.subr.mxu0 0.0
    %1907 = vmatpush1.msra.mxu0 0.0
    %1908 = vmatprep.subr.mxu0 0.0
    %1909 = vmatpush1.msra.mxu0 %v204
    %1910 = vmatprep.subr.mxu0 0.0
    %1911 = vmatpush1.msra.mxu0 %v201
    %1912 = vmatprep.subr.mxu0 0.0
    %1913 = vmatpush1.msra.mxu0 %v198
    %1914 = vmatprep.subr.mxu0 0.0
    %1915 = vmatpush1.msra.mxu0 %v195
    %1916 = vmatprep.subr.mxu0 0.0
    %1917 = vmatpush1.msra.mxu0 %v192
    %1918 = vmatprep.subr.mxu0 0.0
    %1919 = vmatpush1.msra.mxu0 %v189
    %1920 = vmatprep.subr.mxu0 0.0
    %1921 = vmatpush1.msra.mxu0 %v186
    %1922 = vmatprep.subr.mxu0 0.0
    %1923 = vmatpush1.msra.mxu0 %v183
    %1924 = vmatprep.subr.mxu0 0.0
    %1925 = vmatpush1.msra.mxu0 %v180
    %1926 = vmatprep.subr.mxu0 0.0
    %1927 = vmatpush1.msra.mxu0 %v177
    %1928 = vmatprep.subr.mxu0 0.0
    %1929 = vmatpush1.msra.mxu0 %v174
    %1930 = vmatprep.subr.mxu0 0.0
    %1931 = vmatpush1.msra.mxu0 %v171
    %1932 = vmatprep.subr.mxu0 0.0
    %1933 = vmatpush2.msra.mxu0 0.0
    %1934 = vmatprep.subr.mxu0 0.0
    %1935 = vmatpush2.msra.mxu0 0.0
    %1936 = vmatprep.subr.mxu0 0.0
    %1937 = vmatpush2.msra.mxu0 0.0
    %1938 = vmatprep.subr.mxu0 0.0
    %1939 = vmatpush2.msra.mxu0 0.0
    %1940 = vmatprep.subr.mxu0 0.0
    %1941 = vmatpush2.msra.mxu0 0.0
    %1942 = vmatprep.subr.mxu0 0.0
    %1943 = vmatpush2.msra.mxu0 0.0
    %1944 = vmatprep.subr.mxu0 0.0
    %1945 = vmatpush2.msra.mxu0 0.0
    %1946 = vmatprep.subr.mxu0 0.0
    %1947 = vmatpush2.msra.mxu0 0.0
    %1948 = vmatprep.subr.mxu0 0.0
    %1949 = vmatpush2.msra.mxu0 0.0
    %1950 = vmatprep.subr.mxu0 0.0
    %1951 = vmatpush2.msra.mxu0 0.0
    %1952 = vmatprep.subr.mxu0 0.0
    %1953 = vmatpush2.msra.mxu0 0.0
    %1954 = vmatprep.subr.mxu0 0.0
    %1955 = vmatpush2.msra.mxu0 0.0
    %1956 = vmatprep.subr.mxu0 0.0
    %1957 = vmatpush2.msra.mxu0 0.0
    %1958 = vmatprep.subr.mxu0 0.0
    %1959 = vmatpush2.msra.mxu0 0.0
    %1960 = vmatprep.subr.mxu0 0.0
    %1961 = vmatpush2.msra.mxu0 0.0
    %1962 = vmatprep.subr.mxu0 0.0
    %1963 = vmatpush2.msra.mxu0 0.0
    %1964 = vmatprep.mubr.f32.mxu0 0.0
    %1965 = vmatmul.mubr.f32.gmra.mxu0 %v1828
    %v1966 = vpop.f32.mrf.mxu0
    %v1967 = vadd.f32 0.0, %v1966
    %v1968 = vpop.f32.mrf.mxu0
    %1969 = vdwg.mxu0
    %v1970 = vadd.f32 %v1967, %v593
    %v1971 = vmul.f32 %v1970, 0.5
    %v1972 = vtanh.pop %v1971
    %v1973 = vadd.f32 %v1972, 1.0
    %v1974 = vmul.f32 %v1973, 0.5
    %v1975 = vtanh.pop %v1970
    %v1976 = vmul.f32 %v1974, %v1755
    %1978 = vrot.lane.b32.xlu0 %v1975, 64
    %v1979 = vpop.permute.xlu0 %1978
    %v1981 = vmul.f32 %v1974, %v1979
    %1983 = vrot.lane.b32.xlu0 %v1981, 32
    %v1984 = vpop.permute.xlu0 %1983
    %v1986 = vadd.f32 %v1976, %v1984
    %v1987 = vtanh.pop %v1986
    %1989 = vrot.lane.b32.xlu0 %v1987, 64
    %v1990 = vpop.permute.xlu0 %1989
    %v1992 = vmul.f32 %v1974, %v1990
    %1994 = vrot.lane.b32.xlu0 %v1992, 32
    %v1995 = vpop.permute.xlu0 %1994
    %1997 = vst.msk [vmem:[#allocation3 + $0x4] sm:$0x3] %vm1533, %v1995
    %v1998 = vadd.f32 %v1898, %v388
    %v1999 = vmul.f32 %v1998, 0.5
    %v2000 = vtanh.pop %v1999
    %v2001 = vadd.f32 %v2000, 1.0
    %v2002 = vmul.f32 %v2001, 0.5
    %v2003 = vtanh.pop %v1998
    %v2004 = vmul.f32 %v2002, %v1783
    %2006 = vrot.lane.b32.xlu0 %v2003, 64
    %v2007 = vpop.permute.xlu0 %2006
    %v2009 = vmul.f32 %v2002, %v2007
    %2011 = vrot.lane.b32.xlu0 %v2009, 32
    %v2012 = vpop.permute.xlu0 %2011
    %v2014 = vadd.f32 %v2004, %v2012
    %v2015 = vtanh.pop %v2014
    %2017 = vrot.lane.b32.xlu0 %v2015, 64
    %v2018 = vpop.permute.xlu0 %2017
    %v2020 = vmul.f32 %v2002, %v2018
    %2022 = vrot.lane.b32.xlu0 %v2020, 64
    %v2023 = vpop.permute.xlu0 %2022
    %2025 = vrot.lane.b32.xlu0 %v1992, 96
    %v2026 = vpop.permute.xlu0 %2025
    %v2028 = vsel %vm307, %v1816, %v2023
    %v2029 = vsel %vm309, %v2028, %v2026
    %v2031 = vsel %vm205, %v2029, 0
    %2033 = vmatprep.subr.mxu0 0.0
    %2034 = vmatpush1.msra.mxu0 0.0
    %2035 = vmatprep.subr.mxu0 0.0
    %2036 = vmatpush1.msra.mxu0 0.0
    %2037 = vmatprep.subr.mxu0 0.0
    %2038 = vmatpush1.msra.mxu0 0.0
    %2039 = vmatprep.subr.mxu0 0.0
    %2040 = vmatpush1.msra.mxu0 0.0
    %2041 = vmatprep.subr.mxu0 0.0
    %2042 = vmatpush1.msra.mxu0 %v204
    %2043 = vmatprep.subr.mxu0 0.0
    %2044 = vmatpush1.msra.mxu0 %v201
    %2045 = vmatprep.subr.mxu0 0.0
    %2046 = vmatpush1.msra.mxu0 %v198
    %2047 = vmatprep.subr.mxu0 0.0
    %2048 = vmatpush1.msra.mxu0 %v195
    %2049 = vmatprep.subr.mxu0 0.0
    %2050 = vmatpush1.msra.mxu0 %v192
    %2051 = vmatprep.subr.mxu0 0.0
    %2052 = vmatpush1.msra.mxu0 %v189
    %2053 = vmatprep.subr.mxu0 0.0
    %2054 = vmatpush1.msra.mxu0 %v186
    %2055 = vmatprep.subr.mxu0 0.0
    %2056 = vmatpush1.msra.mxu0 %v183
    %2057 = vmatprep.subr.mxu0 0.0
    %2058 = vmatpush1.msra.mxu0 %v180
    %2059 = vmatprep.subr.mxu0 0.0
    %2060 = vmatpush1.msra.mxu0 %v177
    %2061 = vmatprep.subr.mxu0 0.0
    %2062 = vmatpush1.msra.mxu0 %v174
    %2063 = vmatprep.subr.mxu0 0.0
    %2064 = vmatpush1.msra.mxu0 %v171
    %2065 = vmatprep.subr.mxu0 0.0
    %2066 = vmatpush2.msra.mxu0 0.0
    %2067 = vmatprep.subr.mxu0 0.0
    %2068 = vmatpush2.msra.mxu0 0.0
    %2069 = vmatprep.subr.mxu0 0.0
    %2070 = vmatpush2.msra.mxu0 0.0
    %2071 = vmatprep.subr.mxu0 0.0
    %2072 = vmatpush2.msra.mxu0 0.0
    %2073 = vmatprep.subr.mxu0 0.0
    %2074 = vmatpush2.msra.mxu0 0.0
    %2075 = vmatprep.subr.mxu0 0.0
    %2076 = vmatpush2.msra.mxu0 0.0
    %2077 = vmatprep.subr.mxu0 0.0
    %2078 = vmatpush2.msra.mxu0 0.0
    %2079 = vmatprep.subr.mxu0 0.0
    %2080 = vmatpush2.msra.mxu0 0.0
    %2081 = vmatprep.subr.mxu0 0.0
    %2082 = vmatpush2.msra.mxu0 0.0
    %2083 = vmatprep.subr.mxu0 0.0
    %2084 = vmatpush2.msra.mxu0 0.0
    %2085 = vmatprep.subr.mxu0 0.0
    %2086 = vmatpush2.msra.mxu0 0.0
    %2087 = vmatprep.subr.mxu0 0.0
    %2088 = vmatpush2.msra.mxu0 0.0
    %2089 = vmatprep.subr.mxu0 0.0
    %2090 = vmatpush2.msra.mxu0 0.0
    %2091 = vmatprep.subr.mxu0 0.0
    %2092 = vmatpush2.msra.mxu0 0.0
    %2093 = vmatprep.subr.mxu0 0.0
    %2094 = vmatpush2.msra.mxu0 0.0
    %2095 = vmatprep.subr.mxu0 0.0
    %2096 = vmatpush2.msra.mxu0 0.0
    %2097 = vmatprep.mubr.f32.mxu0 0.0
    %2098 = vmatmul.mubr.f32.gmra.mxu0 %v2031
    %v2099 = vpop.f32.mrf.mxu0
    %v2100 = vadd.f32 0.0, %v2099
    %v2101 = vpop.f32.mrf.mxu0
    %2102 = vdwg.mxu0
    %v2103 = vadd.f32 %v2100, %v593
    %v2104 = vmul.f32 %v2103, 0.5
    %v2105 = vtanh.pop %v2104
    %v2106 = vadd.f32 %v2105, 1.0
    %v2107 = vmul.f32 %v2106, 0.5
    %v2108 = vtanh.pop %v2103
    %v2109 = vmul.f32 %v2107, %v1986
    %2111 = vrot.lane.b32.xlu0 %v2108, 64
    %v2112 = vpop.permute.xlu0 %2111
    %v2114 = vmul.f32 %v2107, %v2112
    %2116 = vrot.lane.b32.xlu0 %v2114, 32
    %v2117 = vpop.permute.xlu0 %2116
    %v2119 = vadd.f32 %v2109, %v2117
    %v2120 = vtanh.pop %v2119
    %2122 = vrot.lane.b32.xlu0 %v2120, 64
    %v2123 = vpop.permute.xlu0 %2122
    %v2125 = vmul.f32 %v2107, %v2123
    %2127 = vrot.lane.b32.xlu0 %v2125, 32
    %v2128 = vpop.permute.xlu0 %2127
    %2130 = vst.msk [vmem:[#allocation3 + $0x6] sm:$0x3] %vm1533, %v2128
    %v2131 = vld [vmem:[#allocation7 + $0x88] sm:$0xff]
    %v2132 = vld [vmem:[#allocation7 + $0x90] sm:$0xff]
    %v2133 = vld [vmem:[#allocation7 + $0x98] sm:$0xff]
    %v2134 = vld [vmem:[#allocation7 + $0xa0] sm:$0xff]
    %v2135 = vld [vmem:[#allocation7 + $0x83] sm:$0x1]
    %v2136 = vld [vmem:[#allocation3] sm:$0xff]
    %v2137 = vlaneseq
    %v2138 = vshrl.u32 %v2137, 7
    %v2139 = vsub.s32 0, %v2138
    %v2140 = vrot.slane %v2135, %v2139
    %v2142 = vsel %vm307, %v2136, 0
    %2144 = vmatprep.subr.mxu0 0.0
    %2145 = vmatpush1.msra.mxu0 0.0
    %2146 = vmatprep.subr.mxu0 0.0
    %2147 = vmatpush1.msra.mxu0 0.0
    %2148 = vmatprep.subr.mxu0 0.0
    %2149 = vmatpush1.msra.mxu0 0.0
    %2150 = vmatprep.subr.mxu0 0.0
    %2151 = vmatpush1.msra.mxu0 0.0
    %2152 = vmatprep.subr.mxu0 0.0
    %2153 = vmatpush1.msra.mxu0 0.0
    %2154 = vmatprep.subr.mxu0 0.0
    %2155 = vmatpush1.msra.mxu0 0.0
    %2156 = vmatprep.subr.mxu0 0.0
    %2157 = vmatpush1.msra.mxu0 0.0
    %2158 = vmatprep.subr.mxu0 0.0
    %2159 = vmatpush1.msra.mxu0 0.0
    %2160 = vmatprep.subr.mxu0 0.0
    %2161 = vmatpush1.msra.mxu0 0.0
    %2162 = vmatprep.subr.mxu0 0.0
    %2163 = vmatpush1.msra.mxu0 0.0
    %2164 = vmatprep.subr.mxu0 0.0
    %2165 = vmatpush1.msra.mxu0 0.0
    %2166 = vmatprep.subr.mxu0 0.0
    %2167 = vmatpush1.msra.mxu0 0.0
    %2168 = vmatprep.subr.mxu0 0.0
    %2169 = vmatpush1.msra.mxu0 %v2134
    %2170 = vmatprep.subr.mxu0 0.0
    %2171 = vmatpush1.msra.mxu0 %v2133
    %2172 = vmatprep.subr.mxu0 0.0
    %2173 = vmatpush1.msra.mxu0 %v2132
    %2174 = vmatprep.subr.mxu0 0.0
    %2175 = vmatpush1.msra.mxu0 %v2131
    %2176 = vmatprep.subr.mxu0 0.0
    %2177 = vmatpush2.msra.mxu0 0.0
    %2178 = vmatprep.subr.mxu0 0.0
    %2179 = vmatpush2.msra.mxu0 0.0
    %2180 = vmatprep.subr.mxu0 0.0
    %2181 = vmatpush2.msra.mxu0 0.0
    %2182 = vmatprep.subr.mxu0 0.0
    %2183 = vmatpush2.msra.mxu0 0.0
    %2184 = vmatprep.subr.mxu0 0.0
    %2185 = vmatpush2.msra.mxu0 0.0
    %2186 = vmatprep.subr.mxu0 0.0
    %2187 = vmatpush2.msra.mxu0 0.0
    %2188 = vmatprep.subr.mxu0 0.0
    %2189 = vmatpush2.msra.mxu0 0.0
    %2190 = vmatprep.subr.mxu0 0.0
    %2191 = vmatpush2.msra.mxu0 0.0
    %2192 = vmatprep.subr.mxu0 0.0
    %2193 = vmatpush2.msra.mxu0 0.0
    %2194 = vmatprep.subr.mxu0 0.0
    %2195 = vmatpush2.msra.mxu0 0.0
    %2196 = vmatprep.subr.mxu0 0.0
    %2197 = vmatpush2.msra.mxu0 0.0
    %2198 = vmatprep.subr.mxu0 0.0
    %2199 = vmatpush2.msra.mxu0 0.0
    %2200 = vmatprep.subr.mxu0 0.0
    %2201 = vmatpush2.msra.mxu0 0.0
    %2202 = vmatprep.subr.mxu0 0.0
    %2203 = vmatpush2.msra.mxu0 0.0
    %2204 = vmatprep.subr.mxu0 0.0
    %2205 = vmatpush2.msra.mxu0 0.0
    %2206 = vmatprep.subr.mxu0 0.0
    %2207 = vmatpush2.msra.mxu0 0.0
    %2208 = vmatprep.mubr.f32.mxu0 0.0
    %2209 = vmatmul.mubr.f32.gmra.mxu0 %v2142
    %v2210 = vpop.f32.mrf.mxu0
    %v2211 = vadd.f32 %v2140, %v2210
    %v2212 = vpop.f32.mrf.mxu0
    %2213 = vdwg.mxu0
    %vm2214 = vcmask 64512
    %2215 = vst.msk [vmem:[#allocation10] sm:$0xff] %vm2214, %v2211
    // Predicated region
    $region26: #{tpu_custom_call.1} parent=1 // pred_check
      _
    $region27: #{tpu_custom_call.1} parent=1 // pred_check_branch
      %2217 = sbr.rel (0) target = $region29
    $region28: #{tpu_custom_call.1} parent=1 // pred_region
      %s2219 = ssub.s32 128, 128
      %2220 = vsyncadd [#allocation6], %s2219
      %s2222 = sshll.u32 [#allocation10], 4
      %s2223 = int_to_ptr.vmem [resolvable:$true] %s2222
      %2225 = dma.vmem_to_hbm [thread:$0]  %s2223, 128, %s3, [#allocation6]
    $region29: #{tpu_custom_call.1} parent=1 // pred_fallthru
      _
    // Predicated region
    $region30: #{tpu_custom_call.1} parent=1 // pred_check
      _
    $region31: #{tpu_custom_call.1} parent=1 // pred_check_branch
      %2227 = sbr.rel (0) target = $region33
    $region32: #{tpu_custom_call.1} parent=1 // pred_region
      %2228 = dma.done [#allocation6], 128
    $region33: #{tpu_custom_call.1} parent=1 // pred_fallthru
      _
    %2229 = vsyncpa [#allocation5], 1
    %2230 = vsyncpa [#allocation8], 1
    %2231 = vsyncpa [#allocation6], 1

</llo_original>
